<compile_context>
chip_gen: v5e
topology: v5e:2x2
jax: 0.10.0
libtpu: 0.0.40
codegen_flags: <defaults>
</compile_context>

<pallas_src>
import jax
import jax.numpy as jnp
from jax.experimental import pallas as pl
from jax.experimental.pallas import tpu as pltpu


_APPROX_RECIP = True  # EUP approximate reciprocal for the softmax denominators.


def mha_kernel(q_ref, k_ref, v_ref,
               wq_ref, bq_ref, wk_ref, bk_ref, wv_ref, bv_ref,
               wo_ref, bo_ref, mask_ref,
               o_ref, a_ref):
    """Grid = (batch, T-tile).  Per-step refs:
         q_ref:   [tt, E] query rows of this (batch, tile)
         k_ref:   [S,  E] keys   of this batch item (constant over the T axis)
         v_ref:   [S,  E] values of this batch item (constant over the T axis)
         w*_ref:  [E, E] projection weights pre-transposed to [in, out]
                  (1/sqrt(hd) scaling already folded into wq/bq); b*_ref: [1, E]
         mask_ref:[E, E] block-diagonal head mask (1 where same head)
         o_ref:   [tt, E] output rows
         a_ref:   [E, E] f32 VMEM scratch: blockdiag(softmax(k)^T @ v), cached
                  across the T-tile axis for the current batch item.
    """
    f32 = jnp.float32

    # ---- k/v side: once per batch item (t == 0), cached in VMEM scratch. ----
    @pl.when(pl.program_id(1) == 0)
    def _():
        k = jnp.dot(k_ref[...], wk_ref[...], preferred_element_type=f32) + bk_ref[...]
        v = jnp.dot(v_ref[...], wv_ref[...], preferred_element_type=f32) + bv_ref[...]
        # softmax over src_len (axis 0) is column-independent -> no head slicing.
        ek = jnp.exp(k - jnp.max(k, axis=0, keepdims=True))
        ks = ek * pl.reciprocal(jnp.sum(ek, axis=0, keepdims=True),
                                approx=_APPROX_RECIP)
        # A = softmax(k)^T @ v over the full E; the block-diagonal mask removes
        # the cross-head terms, leaving exactly blockdiag_h(k_h^T @ v_h).
        a = jax.lax.dot_general(ks, v, (((0,), (0,)), ((), ())),
                                preferred_element_type=f32)
        a_ref[...] = a * mask_ref[...]

    # ---- q side: every (batch, T-tile). ----
    q = jnp.dot(q_ref[...], wq_ref[...], preferred_element_type=f32) + bq_ref[...]
    # Per-head softmax over head_dim, MXU style: subtracting the full-row max is
    # valid per head segment, and the per-head sums come from one eq @ mask
    # matmul instead of H lane-masked sub-128 reductions.
    eq = jnp.exp(q - jnp.max(q, axis=-1, keepdims=True))
    num = jnp.dot(eq, a_ref[...], preferred_element_type=f32)
    den = jnp.dot(eq, mask_ref[...], preferred_element_type=f32)
    attn = num * pl.reciprocal(den, approx=_APPROX_RECIP)

    out = jnp.dot(attn, wo_ref[...], preferred_element_type=f32) + bo_ref[...]
    o_ref[...] = out.astype(o_ref.dtype)

    # TODO(synk): key_padding_mask / attn_mask / dropout branches not implemented
    # (forward is exercised with the default None masks and dropout_prob=0.0).


def _choose_t_tile(T, target=256):
    """Largest MXU-friendly divisor of T (multiple of 8) that is <= target."""
    if T <= target:
        return T
    for tt in range(target, 7, -1):
        if T % tt == 0 and tt % 8 == 0:
            return tt
    return T


def multihead_attention(query, key, value, params, num_heads, *, t_tile_target=256):
    """query: [T, B, E], key/value: [S, B, E]  ->  [T, B, E]."""
    T, B, E = query.shape
    S = key.shape[0]
    head_dim = E // num_heads
    assert head_dim * num_heads == E
    scaling = float(head_dim) ** (-0.5)

    # PyTorch Linear stores weight as [out, in]; pre-transpose so the kernel does
    # x @ W on the MXU.  Fold the 1/sqrt(head_dim) scaling into Wq/bq once here
    # instead of a per-grid-step [T, E] VALU pass in the kernel.
    wq_t = (params["wq"] * scaling).T
    bq = (params["bq"] * scaling).reshape(1, E)
    wk_t = params["wk"].T
    bk = params["bk"].reshape(1, E)
    wv_t = params["wv"].T
    bv = params["bv"].reshape(1, E)
    wo_t = params["wo"].T
    bo = params["bo"].reshape(1, E)

    # Constant block-diagonal head mask (1 where row/col belong to the same head).
    hid = jnp.arange(E, dtype=jnp.int32) // head_dim
    head_mask = (hid[:, None] == hid[None, :]).astype(jnp.float32)

    # Collapse [seq, B, E] -> [seq, B*E]: a free reshape (no HBM traffic).  Each
    # batch item is then a lane-aligned E-wide column window, so no boundary
    # transposes are needed and the output lane dim stays dense (E % 128 == 0
    # recommended; the demo uses E = 128).
    q2 = query.reshape(T, B * E)
    k2 = key.reshape(S, B * E)
    v2 = value.reshape(S, B * E)

    tt = _choose_t_tile(T, t_tile_target)
    grid = (B, T // tt)

    def _make(single_buffer_consts):
        const_kw = {}
        if single_buffer_consts:
            # Constant-index blocks never need double buffering; halving their
            # footprint frees VMEM for activation tiles (matters at large E and
            # on v7x's 64 MiB VMEM).
            const_kw = dict(pipeline_mode=pl.Buffered(1))
        w_spec = pl.BlockSpec((E, E), lambda b, t: (0, 0), **const_kw)
        b_spec = pl.BlockSpec((1, E), lambda b, t: (0, 0), **const_kw)
        return pl.pallas_call(
            mha_kernel,
            out_shape=jax.ShapeDtypeStruct((T, B * E), query.dtype),
            grid=grid,
            in_specs=[
                pl.BlockSpec((tt, E), lambda b, t: (t, b)),   # query rows
                pl.BlockSpec((S, E), lambda b, t: (0, b)),    # keys   (per batch)
                pl.BlockSpec((S, E), lambda b, t: (0, b)),    # values (per batch)
                w_spec, b_spec,   # Wq (pre-scaled), bq (pre-scaled)
                w_spec, b_spec,   # Wk, bk
                w_spec, b_spec,   # Wv, bv
                w_spec, b_spec,   # Wo, bo
                w_spec,           # block-diagonal head mask
            ],
            out_specs=pl.BlockSpec((tt, E), lambda b, t: (t, b)),
            scratch_shapes=[pltpu.VMEM((E, E), jnp.float32)],
            compiler_params=pltpu.CompilerParams(
                dimension_semantics=("parallel", "arbitrary"),
                vmem_limit_bytes=64 * 1024 * 1024,
            ),
        )

    args = (q2, k2, v2, wq_t, bq, wk_t, bk, wv_t, bv, wo_t, bo, head_mask)
    try:
        out2 = jax.block_until_ready(_make(True)(*args))
    except Exception:
        # pl.Buffered(1) single-buffering not supported on this jax version ->
        # fall back to default (double-buffered) constant blocks.
        out2 = _make(False)(*args)

    return out2.reshape(T, B, E)


def reference(query, key_, value, params, num_heads):
    """Pure-JAX transliteration of the PyTorch forward pass (masks=None)."""
    T, B, E = query.shape
    S = key_.shape[0]
    hd = E // num_heads
    scaling = float(hd) ** (-0.5)
    lin = lambda x, w, b: x @ w.T + b

    q = lin(query, params["wq"], params["bq"]) * scaling
    k = lin(key_, params["wk"], params["bk"])
    v = lin(value, params["wv"], params["bv"])

    q = q.reshape(T, B * num_heads, hd).transpose(1, 0, 2)   # [B*H, T, hd]
    k = k.reshape(S, B * num_heads, hd).transpose(1, 0, 2)   # [B*H, S, hd]
    v = v.reshape(S, B * num_heads, hd).transpose(1, 0, 2)   # [B*H, S, hd]

    q = jax.nn.softmax(q, axis=-1)
    k = jax.nn.softmax(k, axis=1)

    w = jnp.einsum('bsd,bse->bde', k, v)      # k^T @ v
    o = jnp.einsum('btd,bde->bte', q, w)      # q @ w
    o = o.transpose(1, 0, 2).reshape(T, B, E)
    return lin(o, params["wo"], params["bo"])


if __name__ == "__main__":
    # Small shapes; E is a multiple of 128 so per-batch column windows and the
    # output stores stay lane-dense (perf review item on masked partial stores).
    T, S, B, E, H = 8, 8, 2, 128, 4

    root = jax.random.PRNGKey(0)
    keys = jax.random.split(root, 11)

    def init_w(k, shape):
        bound = 1.0 / (shape[-1] ** 0.5)
        return jax.random.uniform(k, shape, jnp.float32, -bound, bound)

    params = {
        "wq": init_w(keys[0], (E, E)), "bq": init_w(keys[1], (E,)),
        "wk": init_w(keys[2], (E, E)), "bk": init_w(keys[3], (E,)),
        "wv": init_w(keys[4], (E, E)), "bv": init_w(keys[5], (E,)),
        "wo": init_w(keys[6], (E, E)), "bo": init_w(keys[7], (E,)),
    }

    query = jax.random.normal(keys[8], (T, B, E), jnp.float32)
    key_ = jax.random.normal(keys[9], (S, B, E), jnp.float32)
    value = jax.random.normal(keys[10], (S, B, E), jnp.float32)

    out = multihead_attention(query, key_, value, params, H)
    out = jax.block_until_ready(out)

    ref = reference(query, key_, value, params, H)

    assert out.shape == (T, B, E), out.shape
    # approx-reciprocal (EUP) softmax denominators -> compare against the exact
    # f32 reference with a loosened tolerance, per the perf-review note.
    assert jnp.allclose(out, ref, atol=2e-2, rtol=2e-2), \
        f"max abs err {jnp.max(jnp.abs(out - ref))}"

    print("KERNEL_OK")
</pallas_src>

<mosaic_0001>
module attributes {stable_mosaic.version = 11 : i64} {
  func.func @mha_kernel(%arg0: i32, %arg1: i32, %arg2: memref<8x128xf32, #tpu.memory_space<vmem>>, %arg3: memref<8x128xf32, #tpu.memory_space<vmem>>, %arg4: memref<8x128xf32, #tpu.memory_space<vmem>>, %arg5: memref<128x128xf32, #tpu.memory_space<vmem>>, %arg6: memref<1x128xf32, #tpu.memory_space<vmem>>, %arg7: memref<128x128xf32, #tpu.memory_space<vmem>>, %arg8: memref<1x128xf32, #tpu.memory_space<vmem>>, %arg9: memref<128x128xf32, #tpu.memory_space<vmem>>, %arg10: memref<1x128xf32, #tpu.memory_space<vmem>>, %arg11: memref<128x128xf32, #tpu.memory_space<vmem>>, %arg12: memref<1x128xf32, #tpu.memory_space<vmem>>, %arg13: memref<128x128xf32, #tpu.memory_space<vmem>>, %arg14: memref<8x128xf32, #tpu.memory_space<vmem>>, %arg15: memref<128x128xf32, #tpu.memory_space<vmem>>) attributes {dimension_semantics = [#tpu.dimension_semantics<parallel>, #tpu.dimension_semantics<arbitrary>], iteration_bounds = array<i64: 2, 1>, scalar_prefetch = 0 : i64, scratch_operands = 1 : i64, tpu.core_type = #tpu.core_type<tc>, window_params = [{transform_indices = @transform_0, window_bounds = array<i64: 8, 128>}, {transform_indices = @transform_1, window_bounds = array<i64: 8, 128>}, {transform_indices = @transform_2, window_bounds = array<i64: 8, 128>}, {pipeline_mode = #tpu.pipeline_mode<synchronous>, transform_indices = @transform_3, window_bounds = array<i64: 128, 128>}, {pipeline_mode = #tpu.pipeline_mode<synchronous>, transform_indices = @transform_4, window_bounds = array<i64: 1, 128>}, {pipeline_mode = #tpu.pipeline_mode<synchronous>, transform_indices = @transform_5, window_bounds = array<i64: 128, 128>}, {pipeline_mode = #tpu.pipeline_mode<synchronous>, transform_indices = @transform_6, window_bounds = array<i64: 1, 128>}, {pipeline_mode = #tpu.pipeline_mode<synchronous>, transform_indices = @transform_7, window_bounds = array<i64: 128, 128>}, {pipeline_mode = #tpu.pipeline_mode<synchronous>, transform_indices = @transform_8, window_bounds = array<i64: 1, 128>}, {pipeline_mode = #tpu.pipeline_mode<synchronous>, transform_indices = @transform_9, window_bounds = array<i64: 128, 128>}, {pipeline_mode = #tpu.pipeline_mode<synchronous>, transform_indices = @transform_10, window_bounds = array<i64: 1, 128>}, {pipeline_mode = #tpu.pipeline_mode<synchronous>, transform_indices = @transform_11, window_bounds = array<i64: 128, 128>}, {transform_indices = @transform_12, window_bounds = array<i64: 8, 128>}]} {
    %c0_i32 = arith.constant 0 : i32
    %0 = arith.cmpi eq, %arg1, %c0_i32 : i32
    %1 = arith.extui %0 : i1 to i32
    %c0_i32_0 = arith.constant 0 : i32
    %2 = arith.cmpi ne, %1, %c0_i32_0 : i32
    scf.if %2 {
      %c0_20 = arith.constant 0 : index
      %c0_21 = arith.constant 0 : index
      %26 = vector.load %arg3[%c0_20, %c0_21] : memref<8x128xf32, #tpu.memory_space<vmem>>, vector<8x128xf32>
      %c0_22 = arith.constant 0 : index
      %c0_23 = arith.constant 0 : index
      %27 = vector.load %arg7[%c0_22, %c0_23] : memref<128x128xf32, #tpu.memory_space<vmem>>, vector<128x128xf32>
      %cst_24 = arith.constant dense<0.000000e+00> : vector<8x128xf32>
      %28 = tpu.matmul %26, %27, %cst_24 {dimension_numbers = #tpu.dot_dimension_numbers<[1], [0], [0], [1], [0, 0, 1, 1], [], []>} : vector<8x128xf32>, vector<128x128xf32>, vector<8x128xf32> -> vector<8x128xf32>
      %c0_25 = arith.constant 0 : index
      %c0_26 = arith.constant 0 : index
      %29 = vector.load %arg8[%c0_25, %c0_26] : memref<1x128xf32, #tpu.memory_space<vmem>>, vector<1x128xf32>
      %30 = vector.broadcast %29 : vector<1x128xf32> to vector<8x128xf32>
      %31 = arith.addf %28, %30 : vector<8x128xf32>
      %c0_27 = arith.constant 0 : index
      %c0_28 = arith.constant 0 : index
      %32 = vector.load %arg4[%c0_27, %c0_28] : memref<8x128xf32, #tpu.memory_space<vmem>>, vector<8x128xf32>
      %c0_29 = arith.constant 0 : index
      %c0_30 = arith.constant 0 : index
      %33 = vector.load %arg9[%c0_29, %c0_30] : memref<128x128xf32, #tpu.memory_space<vmem>>, vector<128x128xf32>
      %cst_31 = arith.constant dense<0.000000e+00> : vector<8x128xf32>
      %34 = tpu.matmul %32, %33, %cst_31 {dimension_numbers = #tpu.dot_dimension_numbers<[1], [0], [0], [1], [0, 0, 1, 1], [], []>} : vector<8x128xf32>, vector<128x128xf32>, vector<8x128xf32> -> vector<8x128xf32>
      %c0_32 = arith.constant 0 : index
      %c0_33 = arith.constant 0 : index
      %35 = vector.load %arg10[%c0_32, %c0_33] : memref<1x128xf32, #tpu.memory_space<vmem>>, vector<1x128xf32>
      %36 = vector.broadcast %35 : vector<1x128xf32> to vector<8x128xf32>
      %37 = arith.addf %34, %36 : vector<8x128xf32>
      %cst_34 = arith.constant dense<0xFF800000> : vector<128xf32>
      %38 = vector.multi_reduction <maximumf>, %31, %cst_34 [0] : vector<8x128xf32> to vector<128xf32>
      %39 = vector.shape_cast %38 : vector<128xf32> to vector<1x128xf32>
      %40 = vector.broadcast %39 : vector<1x128xf32> to vector<8x128xf32>
      %41 = arith.subf %31, %40 : vector<8x128xf32>
      %42 = math.exp %41 : vector<8x128xf32>
      %cst_35 = arith.constant dense<0.000000e+00> : vector<128xf32>
      %43 = vector.multi_reduction <add>, %42, %cst_35 [0] : vector<8x128xf32> to vector<128xf32>
      %44 = vector.shape_cast %43 : vector<128xf32> to vector<1x128xf32>
      %45 = tpu.reciprocal %44 {approx = true} : vector<1x128xf32> -> vector<1x128xf32>
      %46 = vector.broadcast %45 : vector<1x128xf32> to vector<8x128xf32>
      %47 = arith.mulf %42, %46 : vector<8x128xf32>
      %cst_36 = arith.constant dense<0.000000e+00> : vector<128x128xf32>
      %48 = tpu.matmul %47, %37, %cst_36 {dimension_numbers = #tpu.dot_dimension_numbers<[0], [0], [1], [1], [0, 1, 1, 1], [], []>} : vector<8x128xf32>, vector<8x128xf32>, vector<128x128xf32> -> vector<128x128xf32>
      %c0_37 = arith.constant 0 : index
      %c0_38 = arith.constant 0 : index
      %49 = vector.load %arg13[%c0_37, %c0_38] : memref<128x128xf32, #tpu.memory_space<vmem>>, vector<128x128xf32>
      %50 = arith.mulf %48, %49 : vector<128x128xf32>
      %c0_39 = arith.constant 0 : index
      %c0_40 = arith.constant 0 : index
      %51 = vector.load %arg15[%c0_39, %c0_40] : memref<128x128xf32, #tpu.memory_space<vmem>>, vector<128x128xf32>
      tpu.vector_store %arg15[%c0_39, %c0_40], %50 {strides = array<i32>} : memref<128x128xf32, #tpu.memory_space<vmem>>, vector<128x128xf32>,
    } else {
    }
    %c0 = arith.constant 0 : index
    %c0_1 = arith.constant 0 : index
    %3 = vector.load %arg2[%c0, %c0_1] : memref<8x128xf32, #tpu.memory_space<vmem>>, vector<8x128xf32>
    %c0_2 = arith.constant 0 : index
    %c0_3 = arith.constant 0 : index
    %4 = vector.load %arg5[%c0_2, %c0_3] : memref<128x128xf32, #tpu.memory_space<vmem>>, vector<128x128xf32>
    %cst = arith.constant dense<0.000000e+00> : vector<8x128xf32>
    %5 = tpu.matmul %3, %4, %cst {dimension_numbers = #tpu.dot_dimension_numbers<[1], [0], [0], [1], [0, 0, 1, 1], [], []>} : vector<8x128xf32>, vector<128x128xf32>, vector<8x128xf32> -> vector<8x128xf32>
    %c0_4 = arith.constant 0 : index
    %c0_5 = arith.constant 0 : index
    %6 = vector.load %arg6[%c0_4, %c0_5] : memref<1x128xf32, #tpu.memory_space<vmem>>, vector<1x128xf32>
    %7 = vector.broadcast %6 : vector<1x128xf32> to vector<8x128xf32>
    %8 = arith.addf %5, %7 : vector<8x128xf32>
    %cst_6 = arith.constant dense<0xFF800000> : vector<8xf32>
    %9 = vector.multi_reduction <maximumf>, %8, %cst_6 [1] : vector<8x128xf32> to vector<8xf32>
    %10 = vector.shape_cast %9 : vector<8xf32> to vector<8x1xf32>
    %11 = vector.broadcast %10 : vector<8x1xf32> to vector<8x128xf32>
    %12 = arith.subf %8, %11 : vector<8x128xf32>
    %13 = math.exp %12 : vector<8x128xf32>
    %c0_7 = arith.constant 0 : index
    %c0_8 = arith.constant 0 : index
    %14 = vector.load %arg15[%c0_7, %c0_8] : memref<128x128xf32, #tpu.memory_space<vmem>>, vector<128x128xf32>
    %cst_9 = arith.constant dense<0.000000e+00> : vector<8x128xf32>
    %15 = tpu.matmul %13, %14, %cst_9 {dimension_numbers = #tpu.dot_dimension_numbers<[1], [0], [0], [1], [0, 0, 1, 1], [], []>} : vector<8x128xf32>, vector<128x128xf32>, vector<8x128xf32> -> vector<8x128xf32>
    %c0_10 = arith.constant 0 : index
    %c0_11 = arith.constant 0 : index
    %16 = vector.load %arg13[%c0_10, %c0_11] : memref<128x128xf32, #tpu.memory_space<vmem>>, vector<128x128xf32>
    %cst_12 = arith.constant dense<0.000000e+00> : vector<8x128xf32>
    %17 = tpu.matmul %13, %16, %cst_12 {dimension_numbers = #tpu.dot_dimension_numbers<[1], [0], [0], [1], [0, 0, 1, 1], [], []>} : vector<8x128xf32>, vector<128x128xf32>, vector<8x128xf32> -> vector<8x128xf32>
    %18 = tpu.reciprocal %17 {approx = true} : vector<8x128xf32> -> vector<8x128xf32>
    %19 = arith.mulf %15, %18 : vector<8x128xf32>
    %c0_13 = arith.constant 0 : index
    %c0_14 = arith.constant 0 : index
    %20 = vector.load %arg11[%c0_13, %c0_14] : memref<128x128xf32, #tpu.memory_space<vmem>>, vector<128x128xf32>
    %cst_15 = arith.constant dense<0.000000e+00> : vector<8x128xf32>
    %21 = tpu.matmul %19, %20, %cst_15 {dimension_numbers = #tpu.dot_dimension_numbers<[1], [0], [0], [1], [0, 0, 1, 1], [], []>} : vector<8x128xf32>, vector<128x128xf32>, vector<8x128xf32> -> vector<8x128xf32>
    %c0_16 = arith.constant 0 : index
    %c0_17 = arith.constant 0 : index
    %22 = vector.load %arg12[%c0_16, %c0_17] : memref<1x128xf32, #tpu.memory_space<vmem>>, vector<1x128xf32>
    %23 = vector.broadcast %22 : vector<1x128xf32> to vector<8x128xf32>
    %24 = arith.addf %21, %23 : vector<8x128xf32>
    %c0_18 = arith.constant 0 : index
    %c0_19 = arith.constant 0 : index
    %25 = vector.load %arg14[%c0_18, %c0_19] : memref<8x128xf32, #tpu.memory_space<vmem>>, vector<8x128xf32>
    tpu.vector_store %arg14[%c0_18, %c0_19], %24 {strides = array<i32>} : memref<8x128xf32, #tpu.memory_space<vmem>>, vector<8x128xf32>,
    return
  }
  func.func @transform_0(%arg0: i32, %arg1: i32) -> (i32, i32) {
    %c0_i32 = arith.constant 0 : i32
    return %arg1, %arg0 : i32, i32
  }
  func.func @transform_1(%arg0: i32, %arg1: i32) -> (i32, i32) {
    %c0_i32 = arith.constant 0 : i32
    %c0_i32_0 = arith.constant 0 : i32
    return %c0_i32, %arg0 : i32, i32
  }
  func.func @transform_2(%arg0: i32, %arg1: i32) -> (i32, i32) {
    %c0_i32 = arith.constant 0 : i32
    %c0_i32_0 = arith.constant 0 : i32
    return %c0_i32, %arg0 : i32, i32
  }
  func.func @transform_3(%arg0: i32, %arg1: i32) -> (i32, i32) {
    %c0_i32 = arith.constant 0 : i32
    %c0_i32_0 = arith.constant 0 : i32
    %c0_i32_1 = arith.constant 0 : i32
    return %c0_i32, %c0_i32_0 : i32, i32
  }
  func.func @transform_4(%arg0: i32, %arg1: i32) -> (i32, i32) {
    %c0_i32 = arith.constant 0 : i32
    %c0_i32_0 = arith.constant 0 : i32
    %c0_i32_1 = arith.constant 0 : i32
    return %c0_i32, %c0_i32_0 : i32, i32
  }
  func.func @transform_5(%arg0: i32, %arg1: i32) -> (i32, i32) {
    %c0_i32 = arith.constant 0 : i32
    %c0_i32_0 = arith.constant 0 : i32
    %c0_i32_1 = arith.constant 0 : i32
    return %c0_i32, %c0_i32_0 : i32, i32
  }
  func.func @transform_6(%arg0: i32, %arg1: i32) -> (i32, i32) {
    %c0_i32 = arith.constant 0 : i32
    %c0_i32_0 = arith.constant 0 : i32
    %c0_i32_1 = arith.constant 0 : i32
    return %c0_i32, %c0_i32_0 : i32, i32
  }
  func.func @transform_7(%arg0: i32, %arg1: i32) -> (i32, i32) {
    %c0_i32 = arith.constant 0 : i32
    %c0_i32_0 = arith.constant 0 : i32
    %c0_i32_1 = arith.constant 0 : i32
    return %c0_i32, %c0_i32_0 : i32, i32
  }
  func.func @transform_8(%arg0: i32, %arg1: i32) -> (i32, i32) {
    %c0_i32 = arith.constant 0 : i32
    %c0_i32_0 = arith.constant 0 : i32
    %c0_i32_1 = arith.constant 0 : i32
    return %c0_i32, %c0_i32_0 : i32, i32
  }
  func.func @transform_9(%arg0: i32, %arg1: i32) -> (i32, i32) {
    %c0_i32 = arith.constant 0 : i32
    %c0_i32_0 = arith.constant 0 : i32
    %c0_i32_1 = arith.constant 0 : i32
    return %c0_i32, %c0_i32_0 : i32, i32
  }
  func.func @transform_10(%arg0: i32, %arg1: i32) -> (i32, i32) {
    %c0_i32 = arith.constant 0 : i32
    %c0_i32_0 = arith.constant 0 : i32
    %c0_i32_1 = arith.constant 0 : i32
    return %c0_i32, %c0_i32_0 : i32, i32
  }
  func.func @transform_11(%arg0: i32, %arg1: i32) -> (i32, i32) {
    %c0_i32 = arith.constant 0 : i32
    %c0_i32_0 = arith.constant 0 : i32
    %c0_i32_1 = arith.constant 0 : i32
    return %c0_i32, %c0_i32_0 : i32, i32
  }
  func.func @transform_12(%arg0: i32, %arg1: i32) -> (i32, i32) {
    %c0_i32 = arith.constant 0 : i32
    return %arg1, %arg0 : i32, i32
  }
}

module attributes {stable_mosaic.version = 11 : i64} {
  func.func @mha_kernel(%arg0: i32, %arg1: i32, %arg2: memref<8x128xf32, #tpu.memory_space<vmem>>, %arg3: memref<8x128xf32, #tpu.memory_space<vmem>>, %arg4: memref<8x128xf32, #tpu.memory_space<vmem>>, %arg5: memref<128x128xf32, #tpu.memory_space<vmem>>, %arg6: memref<1x128xf32, #tpu.memory_space<vmem>>, %arg7: memref<128x128xf32, #tpu.memory_space<vmem>>, %arg8: memref<1x128xf32, #tpu.memory_space<vmem>>, %arg9: memref<128x128xf32, #tpu.memory_space<vmem>>, %arg10: memref<1x128xf32, #tpu.memory_space<vmem>>, %arg11: memref<128x128xf32, #tpu.memory_space<vmem>>, %arg12: memref<1x128xf32, #tpu.memory_space<vmem>>, %arg13: memref<128x128xf32, #tpu.memory_space<vmem>>, %arg14: memref<8x128xf32, #tpu.memory_space<vmem>>, %arg15: memref<128x128xf32, #tpu.memory_space<vmem>>) attributes {dimension_semantics = [#tpu.dimension_semantics<parallel>, #tpu.dimension_semantics<arbitrary>], iteration_bounds = array<i64: 2, 1>, scalar_prefetch = 0 : i64, scratch_operands = 1 : i64, tpu.core_type = #tpu.core_type<tc>, window_params = [{transform_indices = @transform_0, window_bounds = array<i64: 8, 128>}, {transform_indices = @transform_1, window_bounds = array<i64: 8, 128>}, {transform_indices = @transform_2, window_bounds = array<i64: 8, 128>}, {pipeline_mode = #tpu.pipeline_mode<synchronous>, transform_indices = @transform_3, window_bounds = array<i64: 128, 128>}, {pipeline_mode = #tpu.pipeline_mode<synchronous>, transform_indices = @transform_4, window_bounds = array<i64: 1, 128>}, {pipeline_mode = #tpu.pipeline_mode<synchronous>, transform_indices = @transform_5, window_bounds = array<i64: 128, 128>}, {pipeline_mode = #tpu.pipeline_mode<synchronous>, transform_indices = @transform_6, window_bounds = array<i64: 1, 128>}, {pipeline_mode = #tpu.pipeline_mode<synchronous>, transform_indices = @transform_7, window_bounds = array<i64: 128, 128>}, {pipeline_mode = #tpu.pipeline_mode<synchronous>, transform_indices = @transform_8, window_bounds = array<i64: 1, 128>}, {pipeline_mode = #tpu.pipeline_mode<synchronous>, transform_indices = @transform_9, window_bounds = array<i64: 128, 128>}, {pipeline_mode = #tpu.pipeline_mode<synchronous>, transform_indices = @transform_10, window_bounds = array<i64: 1, 128>}, {pipeline_mode = #tpu.pipeline_mode<synchronous>, transform_indices = @transform_11, window_bounds = array<i64: 128, 128>}, {transform_indices = @transform_12, window_bounds = array<i64: 8, 128>}]} {
    %c0_i32 = arith.constant 0 : i32
    %0 = arith.cmpi eq, %arg1, %c0_i32 : i32
    %1 = arith.extui %0 : i1 to i32
    %c0_i32_0 = arith.constant 0 : i32
    %2 = arith.cmpi ne, %1, %c0_i32_0 : i32
    scf.if %2 {
      %c0_20 = arith.constant 0 : index
      %c0_21 = arith.constant 0 : index
      %26 = vector.load %arg3[%c0_20, %c0_21] : memref<8x128xf32, #tpu.memory_space<vmem>>, vector<8x128xf32>
      %c0_22 = arith.constant 0 : index
      %c0_23 = arith.constant 0 : index
      %27 = vector.load %arg7[%c0_22, %c0_23] : memref<128x128xf32, #tpu.memory_space<vmem>>, vector<128x128xf32>
      %cst_24 = arith.constant dense<0.000000e+00> : vector<8x128xf32>
      %28 = tpu.matmul %26, %27, %cst_24 {dimension_numbers = #tpu.dot_dimension_numbers<[1], [0], [0], [1], [0, 0, 1, 1], [], []>} : vector<8x128xf32>, vector<128x128xf32>, vector<8x128xf32> -> vector<8x128xf32>
      %c0_25 = arith.constant 0 : index
      %c0_26 = arith.constant 0 : index
      %29 = vector.load %arg8[%c0_25, %c0_26] : memref<1x128xf32, #tpu.memory_space<vmem>>, vector<1x128xf32>
      %30 = vector.broadcast %29 : vector<1x128xf32> to vector<8x128xf32>
      %31 = arith.addf %28, %30 : vector<8x128xf32>
      %c0_27 = arith.constant 0 : index
      %c0_28 = arith.constant 0 : index
      %32 = vector.load %arg4[%c0_27, %c0_28] : memref<8x128xf32, #tpu.memory_space<vmem>>, vector<8x128xf32>
      %c0_29 = arith.constant 0 : index
      %c0_30 = arith.constant 0 : index
      %33 = vector.load %arg9[%c0_29, %c0_30] : memref<128x128xf32, #tpu.memory_space<vmem>>, vector<128x128xf32>
      %cst_31 = arith.constant dense<0.000000e+00> : vector<8x128xf32>
      %34 = tpu.matmul %32, %33, %cst_31 {dimension_numbers = #tpu.dot_dimension_numbers<[1], [0], [0], [1], [0, 0, 1, 1], [], []>} : vector<8x128xf32>, vector<128x128xf32>, vector<8x128xf32> -> vector<8x128xf32>
      %c0_32 = arith.constant 0 : index
      %c0_33 = arith.constant 0 : index
      %35 = vector.load %arg10[%c0_32, %c0_33] : memref<1x128xf32, #tpu.memory_space<vmem>>, vector<1x128xf32>
      %36 = vector.broadcast %35 : vector<1x128xf32> to vector<8x128xf32>
      %37 = arith.addf %34, %36 : vector<8x128xf32>
      %cst_34 = arith.constant dense<0xFF800000> : vector<128xf32>
      %38 = vector.multi_reduction <maximumf>, %31, %cst_34 [0] : vector<8x128xf32> to vector<128xf32>
      %39 = vector.shape_cast %38 : vector<128xf32> to vector<1x128xf32>
      %40 = vector.broadcast %39 : vector<1x128xf32> to vector<8x128xf32>
      %41 = arith.subf %31, %40 : vector<8x128xf32>
      %42 = math.exp %41 : vector<8x128xf32>
      %cst_35 = arith.constant dense<0.000000e+00> : vector<128xf32>
      %43 = vector.multi_reduction <add>, %42, %cst_35 [0] : vector<8x128xf32> to vector<128xf32>
      %44 = vector.shape_cast %43 : vector<128xf32> to vector<1x128xf32>
      %45 = tpu.reciprocal %44 {approx = true} : vector<1x128xf32> -> vector<1x128xf32>
      %46 = vector.broadcast %45 : vector<1x128xf32> to vector<8x128xf32>
      %47 = arith.mulf %42, %46 : vector<8x128xf32>
      %cst_36 = arith.constant dense<0.000000e+00> : vector<128x128xf32>
      %48 = tpu.matmul %47, %37, %cst_36 {dimension_numbers = #tpu.dot_dimension_numbers<[0], [0], [1], [1], [0, 1, 1, 1], [], []>} : vector<8x128xf32>, vector<8x128xf32>, vector<128x128xf32> -> vector<128x128xf32>
      %c0_37 = arith.constant 0 : index
      %c0_38 = arith.constant 0 : index
      %49 = vector.load %arg13[%c0_37, %c0_38] : memref<128x128xf32, #tpu.memory_space<vmem>>, vector<128x128xf32>
      %50 = arith.mulf %48, %49 : vector<128x128xf32>
      %c0_39 = arith.constant 0 : index
      %c0_40 = arith.constant 0 : index
      %51 = vector.load %arg15[%c0_39, %c0_40] : memref<128x128xf32, #tpu.memory_space<vmem>>, vector<128x128xf32>
      tpu.vector_store %arg15[%c0_39, %c0_40], %50 {strides = array<i32>} : memref<128x128xf32, #tpu.memory_space<vmem>>, vector<128x128xf32>,
    } else {
    }
    %c0 = arith.constant 0 : index
    %c0_1 = arith.constant 0 : index
    %3 = vector.load %arg2[%c0, %c0_1] : memref<8x128xf32, #tpu.memory_space<vmem>>, vector<8x128xf32>
    %c0_2 = arith.constant 0 : index
    %c0_3 = arith.constant 0 : index
    %4 = vector.load %arg5[%c0_2, %c0_3] : memref<128x128xf32, #tpu.memory_space<vmem>>, vector<128x128xf32>
    %cst = arith.constant dense<0.000000e+00> : vector<8x128xf32>
    %5 = tpu.matmul %3, %4, %cst {dimension_numbers = #tpu.dot_dimension_numbers<[1], [0], [0], [1], [0, 0, 1, 1], [], []>} : vector<8x128xf32>, vector<128x128xf32>, vector<8x128xf32> -> vector<8x128xf32>
    %c0_4 = arith.constant 0 : index
    %c0_5 = arith.constant 0 : index
    %6 = vector.load %arg6[%c0_4, %c0_5] : memref<1x128xf32, #tpu.memory_space<vmem>>, vector<1x128xf32>
    %7 = vector.broadcast %6 : vector<1x128xf32> to vector<8x128xf32>
    %8 = arith.addf %5, %7 : vector<8x128xf32>
    %cst_6 = arith.constant dense<0xFF800000> : vector<8xf32>
    %9 = vector.multi_reduction <maximumf>, %8, %cst_6 [1] : vector<8x128xf32> to vector<8xf32>
    %10 = vector.shape_cast %9 : vector<8xf32> to vector<8x1xf32>
    %11 = vector.broadcast %10 : vector<8x1xf32> to vector<8x128xf32>
    %12 = arith.subf %8, %11 : vector<8x128xf32>
    %13 = math.exp %12 : vector<8x128xf32>
    %c0_7 = arith.constant 0 : index
    %c0_8 = arith.constant 0 : index
    %14 = vector.load %arg15[%c0_7, %c0_8] : memref<128x128xf32, #tpu.memory_space<vmem>>, vector<128x128xf32>
    %cst_9 = arith.constant dense<0.000000e+00> : vector<8x128xf32>
    %15 = tpu.matmul %13, %14, %cst_9 {dimension_numbers = #tpu.dot_dimension_numbers<[1], [0], [0], [1], [0, 0, 1, 1], [], []>} : vector<8x128xf32>, vector<128x128xf32>, vector<8x128xf32> -> vector<8x128xf32>
    %c0_10 = arith.constant 0 : index
    %c0_11 = arith.constant 0 : index
    %16 = vector.load %arg13[%c0_10, %c0_11] : memref<128x128xf32, #tpu.memory_space<vmem>>, vector<128x128xf32>
    %cst_12 = arith.constant dense<0.000000e+00> : vector<8x128xf32>
    %17 = tpu.matmul %13, %16, %cst_12 {dimension_numbers = #tpu.dot_dimension_numbers<[1], [0], [0], [1], [0, 0, 1, 1], [], []>} : vector<8x128xf32>, vector<128x128xf32>, vector<8x128xf32> -> vector<8x128xf32>
    %18 = tpu.reciprocal %17 {approx = true} : vector<8x128xf32> -> vector<8x128xf32>
    %19 = arith.mulf %15, %18 : vector<8x128xf32>
    %c0_13 = arith.constant 0 : index
    %c0_14 = arith.constant 0 : index
    %20 = vector.load %arg11[%c0_13, %c0_14] : memref<128x128xf32, #tpu.memory_space<vmem>>, vector<128x128xf32>
    %cst_15 = arith.constant dense<0.000000e+00> : vector<8x128xf32>
    %21 = tpu.matmul %19, %20, %cst_15 {dimension_numbers = #tpu.dot_dimension_numbers<[1], [0], [0], [1], [0, 0, 1, 1], [], []>} : vector<8x128xf32>, vector<128x128xf32>, vector<8x128xf32> -> vector<8x128xf32>
    %c0_16 = arith.constant 0 : index
    %c0_17 = arith.constant 0 : index
    %22 = vector.load %arg12[%c0_16, %c0_17] : memref<1x128xf32, #tpu.memory_space<vmem>>, vector<1x128xf32>
    %23 = vector.broadcast %22 : vector<1x128xf32> to vector<8x128xf32>
    %24 = arith.addf %21, %23 : vector<8x128xf32>
    %c0_18 = arith.constant 0 : index
    %c0_19 = arith.constant 0 : index
    %25 = vector.load %arg14[%c0_18, %c0_19] : memref<8x128xf32, #tpu.memory_space<vmem>>, vector<8x128xf32>
    tpu.vector_store %arg14[%c0_18, %c0_19], %24 {strides = array<i32>} : memref<8x128xf32, #tpu.memory_space<vmem>>, vector<8x128xf32>,
    return
  }
  func.func @transform_0(%arg0: i32, %arg1: i32) -> (i32, i32) {
    %c0_i32 = arith.constant 0 : i32
    return %arg1, %arg0 : i32, i32
  }
  func.func @transform_1(%arg0: i32, %arg1: i32) -> (i32, i32) {
    %c0_i32 = arith.constant 0 : i32
    %c0_i32_0 = arith.constant 0 : i32
    return %c0_i32, %arg0 : i32, i32
  }
  func.func @transform_2(%arg0: i32, %arg1: i32) -> (i32, i32) {
    %c0_i32 = arith.constant 0 : i32
    %c0_i32_0 = arith.constant 0 : i32
    return %c0_i32, %arg0 : i32, i32
  }
  func.func @transform_3(%arg0: i32, %arg1: i32) -> (i32, i32) {
    %c0_i32 = arith.constant 0 : i32
    %c0_i32_0 = arith.constant 0 : i32
    %c0_i32_1 = arith.constant 0 : i32
    return %c0_i32, %c0_i32_0 : i32, i32
  }
  func.func @transform_4(%arg0: i32, %arg1: i32) -> (i32, i32) {
    %c0_i32 = arith.constant 0 : i32
    %c0_i32_0 = arith.constant 0 : i32
    %c0_i32_1 = arith.constant 0 : i32
    return %c0_i32, %c0_i32_0 : i32, i32
  }
  func.func @transform_5(%arg0: i32, %arg1: i32) -> (i32, i32) {
    %c0_i32 = arith.constant 0 : i32
    %c0_i32_0 = arith.constant 0 : i32
    %c0_i32_1 = arith.constant 0 : i32
    return %c0_i32, %c0_i32_0 : i32, i32
  }
  func.func @transform_6(%arg0: i32, %arg1: i32) -> (i32, i32) {
    %c0_i32 = arith.constant 0 : i32
    %c0_i32_0 = arith.constant 0 : i32
    %c0_i32_1 = arith.constant 0 : i32
    return %c0_i32, %c0_i32_0 : i32, i32
  }
  func.func @transform_7(%arg0: i32, %arg1: i32) -> (i32, i32) {
    %c0_i32 = arith.constant 0 : i32
    %c0_i32_0 = arith.constant 0 : i32
    %c0_i32_1 = arith.constant 0 : i32
    return %c0_i32, %c0_i32_0 : i32, i32
  }
  func.func @transform_8(%arg0: i32, %arg1: i32) -> (i32, i32) {
    %c0_i32 = arith.constant 0 : i32
    %c0_i32_0 = arith.constant 0 : i32
    %c0_i32_1 = arith.constant 0 : i32
    return %c0_i32, %c0_i32_0 : i32, i32
  }
  func.func @transform_9(%arg0: i32, %arg1: i32) -> (i32, i32) {
    %c0_i32 = arith.constant 0 : i32
    %c0_i32_0 = arith.constant 0 : i32
    %c0_i32_1 = arith.constant 0 : i32
    return %c0_i32, %c0_i32_0 : i32, i32
  }
  func.func @transform_10(%arg0: i32, %arg1: i32) -> (i32, i32) {
    %c0_i32 = arith.constant 0 : i32
    %c0_i32_0 = arith.constant 0 : i32
    %c0_i32_1 = arith.constant 0 : i32
    return %c0_i32, %c0_i32_0 : i32, i32
  }
  func.func @transform_11(%arg0: i32, %arg1: i32) -> (i32, i32) {
    %c0_i32 = arith.constant 0 : i32
    %c0_i32_0 = arith.constant 0 : i32
    %c0_i32_1 = arith.constant 0 : i32
    return %c0_i32, %c0_i32_0 : i32, i32
  }
  func.func @transform_12(%arg0: i32, %arg1: i32) -> (i32, i32) {
    %c0_i32 = arith.constant 0 : i32
    return %arg1, %arg0 : i32, i32
  }
}

</mosaic_0001>

<llo_original>
// kernel: tpu_custom_call.1
$region0: #{tpu_custom_call.1}
  #allocation0 [shape = 'u32[]', space=smem, size = 0x4, offset = 0x4, fixed_abs, tag = 'smem constant byte address 0x4 - core index']
  #allocation1 [shape = 'u32[72,128]{1,0:T(1,128)}', space=vmem, size = 0x9000, scoped, tag = 'internal scratch']
  #allocation2 [shape = 'f32[128,128]{1,0:T(8,128)}', space=vmem, size = 0x10000, scoped, tag = 'scratch operand']
  %s0 = inlined_call_operand.hbm [shape: f32[8,256], index: 0, kind: input, shape index: {}]
  %s1 = inlined_call_operand.hbm [shape: f32[8,256], index: 1, kind: input, shape index: {}]
  %s2 = inlined_call_operand.hbm [shape: f32[8,256], index: 2, kind: input, shape index: {}]
  %s3 = inlined_call_operand.hbm [shape: f32[128,128], index: 3, kind: input, shape index: {}]
  %s4 = inlined_call_operand.vmem [shape: f32[1,128], index: 4, kind: input, shape index: {}]
  %s5 = inlined_call_operand.hbm [shape: f32[128,128], index: 5, kind: input, shape index: {}]
  %s6 = inlined_call_operand.vmem [shape: f32[1,128], index: 6, kind: input, shape index: {}]
  %s7 = inlined_call_operand.hbm [shape: f32[128,128], index: 7, kind: input, shape index: {}]
  %s8 = inlined_call_operand.vmem [shape: f32[1,128], index: 8, kind: input, shape index: {}]
  %s9 = inlined_call_operand.hbm [shape: f32[128,128], index: 9, kind: input, shape index: {}]
  %s10 = inlined_call_operand.vmem [shape: f32[1,128], index: 10, kind: input, shape index: {}]
  %s11 = inlined_call_operand.hbm [shape: f32[128,128], index: 11, kind: input, shape index: {}]
  %s12 = inlined_call_operand.hbm [shape: f32[8,256], index: 12, kind: output, shape index: {}]
  %s13 = sld [smem:[#allocation0]]
  $region117: #{tpu_custom_call.1} parent=0
    _
  %s15 = ssub.s32 1, %s13
  %s16 = scalar_select 0, %s15, %s13
  $region1: #{tpu_custom_call.1} parent=0
    #allocation3 [shape = 'u8[8192]{0}', space=vmem, size = 0x2000, scoped, tag = 'input window, operand 0']
    #allocation4 [shape = 's32[2]{0}', space=sflag, size = 0x8, scoped, tag = 'scoped memory for tpu_custom_call.1']
    #allocation5 [shape = 's32[2]{0}', space=sflag, size = 0x8, scoped, tag = 'scoped memory for tpu_custom_call.1']
    #allocation6 [shape = 'u8[8192]{0}', space=vmem, size = 0x2000, scoped, tag = 'input window, operand 1']
    #allocation7 [shape = 's32[2]{0}', space=sflag, size = 0x8, scoped, tag = 'scoped memory for tpu_custom_call.1']
    #allocation8 [shape = 'u8[8192]{0}', space=vmem, size = 0x2000, scoped, tag = 'input window, operand 2']
    #allocation9 [shape = 'u8[65536]{0}', space=vmem, size = 0x10000, scoped, tag = 'input window, operand 3, single buffered']
    #allocation10 [shape = 's32[1]{0}', space=sflag, size = 0x4, scoped, tag = 'scoped memory for tpu_custom_call.1']
    #allocation11 [shape = 'u8[65536]{0}', space=vmem, size = 0x10000, scoped, tag = 'input window, operand 5, single buffered']
    #allocation12 [shape = 'u8[65536]{0}', space=vmem, size = 0x10000, scoped, tag = 'input window, operand 7, single buffered']
    #allocation13 [shape = 's32[1]{0}', space=sflag, size = 0x4, scoped, tag = 'scoped memory for tpu_custom_call.1']
    #allocation14 [shape = 'u8[65536]{0}', space=vmem, size = 0x10000, scoped, tag = 'input window, operand 9, single buffered']
    #allocation15 [shape = 'u8[65536]{0}', space=vmem, size = 0x10000, scoped, tag = 'input window, operand 11, single buffered']
    #allocation16 [shape = 's32[1]{0}', space=sflag, size = 0x4, scoped, tag = 'scoped memory for tpu_custom_call.1']
    #allocation17 [shape = 'u8[8192]{0}', space=vmem, size = 0x2000, scoped, tag = 'output window, operand 0']
    %17 = vsyncpa [#allocation4], 0
    %s18 = scalar_lea.sflag [#allocation4], 1
    %19 = vsyncpa %s18, 0
    %20 = vsyncpa [#allocation7], 0
    %s21 = scalar_lea.sflag [#allocation7], 1
    %22 = vsyncpa %s21, 0
    %23 = vsyncpa [#allocation10], 0
    %24 = vsyncpa [#allocation13], 0
    %25 = vsyncpa [#allocation16], 0
    %26 = vsyncpa [#allocation5], 0
    %s27 = scalar_lea.sflag [#allocation5], 1
    %28 = vsyncpa %s27, 0
    loop: start=0, step=1, limit=4
    $region2: #{tpu_custom_call.1} parent=1 // loop_pre_header
      _
    $region3: #{tpu_custom_call.1} parent=1 // loop_header
      %s30 = sphi 0, %s34
      %p31 = scmp.ge.s32.totalorder %s30, 4
      %s37 = sphi 0, %s49
      %s38 = sphi 0, %s45
      %s39 = sphi 0, %s37
      %s40 = sphi 0, %s38
      %s41 = sphi 0, %s39
      %s42 = sphi 0, %s40
      %s54 = sphi 0, %s56
      %s57 = sphi 0, %s54
      %s58 = sphi 0, %s57
      %s74 = sphi 0, %s58
      %s80 = sphi 0, %s82
      %s83 = sphi 0, %s80
      %s84 = sphi 0, %s83
      %s100 = sphi 0, %s84
      %s106 = sphi 0, %s108
      %s109 = sphi 0, %s106
      %s110 = sphi 0, %s109
      %s126 = sphi 0, %s110
      %s130 = sphi 0, %s130
      %s132 = sphi 0, %s130
      %s133 = sphi 0, %s132
      %s147 = sphi 0, %s133
      %s151 = sphi 0, %s151
      %s153 = sphi 0, %s151
      %s154 = sphi 0, %s153
      %s168 = sphi 0, %s154
      %s172 = sphi 0, %s172
      %s174 = sphi 0, %s172
      %s175 = sphi 0, %s174
      %s189 = sphi 0, %s175
      %s193 = sphi 0, %s193
      %s195 = sphi 0, %s193
      %s196 = sphi 0, %s195
      %s210 = sphi 0, %s196
      %s214 = sphi 0, %s214
      %s216 = sphi 0, %s214
      %s217 = sphi 0, %s216
      %s231 = sphi 0, %s217
      %s235 = sphi 0, %s235
      %s237 = sphi 0, %s235
      %s238 = sphi 0, %s237
      %s252 = sphi 0, %s238
      %s256 = sphi 0, %s256
      %s258 = sphi 0, %s256
      %s259 = sphi 0, %s258
      %s273 = sphi 0, %s259
      %s277 = sphi 0, %s277
      %s279 = sphi 0, %s277
      %s280 = sphi 0, %s279
      %s294 = sphi 0, %s280
      %s298 = sphi 0, %s298
      %s300 = sphi 0, %s298
      %s301 = sphi 0, %s300
      %s315 = sphi 0, %s301
      %s323 = sphi 0, %s325
      %s326 = sphi 0, %s323
      %s327 = sphi 0, %s326
      %s343 = sphi 0, %s327
    $region4: #{tpu_custom_call.1} parent=1 // loop_header_branch
      %33 = sbr.rel (%p31) target = $region8
    $region5: #{tpu_custom_call.1} parent=1 // loop_body
      %s35 = ssub.s32 %s30, 1
      %s36 = ssub.s32 %s30, 2
      %s43 = sadd.s32 1, %s38
      %p44 = scmp.ge.s32.totalorder %s43, 1
      %s45 = scalar_select %p44, 0, %s43
      %s46 = sadd.s32 1, %s37
      %s47 = scalar_select %p44, %s46, %s37
      %p48 = scmp.ge.s32.totalorder %s47, 2
      %s49 = scalar_select %p48, 0, %s47
      %s50 = ssub.s32 %s38, %s45
      %s51 = ssub.s32 %s37, %s49
      %s52 = sor.u32 %s50, %s51
      %p53 = scmp.eq.s32.totalorder %s52, 0
      %s55 = sadd.s32 %s54, 1
      %s56 = scalar_select %p53, %s54, %s55
      %p59 = pneg %p53
      %p60 = scmp.eq.s32.totalorder %s30, 1
      %p61 = por %p59, %p60
      %p62 = scmp.ne.s32.totalorder %s54, %s57
      %p63 = scmp.eq.s32.totalorder %s30, 0
      %p64 = por %p62, %p63
      %p65 = scmp.ne.s32.totalorder %s54, %s57
      %p66 = scmp.eq.s32.totalorder %s35, 1
      %p67 = por %p65, %p66
      %p68 = scmp.ne.s32.totalorder %s57, %s58
      %p69 = scmp.eq.s32.totalorder %s35, 0
      %p70 = por %p68, %p69
      %p71 = scmp.ne.s32.totalorder %s57, %s58
      %p72 = scmp.eq.s32.totalorder %s36, 1
      %p73 = por %p71, %p72
      %p75 = scmp.ne.s32.totalorder %s58, %s74
      %p76 = scmp.eq.s32.totalorder %s36, 0
      %p77 = por %p75, %p76
      %s78 = ssub.s32 %s37, %s49
      %p79 = scmp.eq.s32.totalorder %s78, 0
      %s81 = sadd.s32 %s80, 1
      %s82 = scalar_select %p79, %s80, %s81
      %p85 = pneg %p79
      %p86 = scmp.eq.s32.totalorder %s30, 1
      %p87 = por %p85, %p86
      %p88 = scmp.ne.s32.totalorder %s80, %s83
      %p89 = scmp.eq.s32.totalorder %s30, 0
      %p90 = por %p88, %p89
      %p91 = scmp.ne.s32.totalorder %s80, %s83
      %p92 = scmp.eq.s32.totalorder %s35, 1
      %p93 = por %p91, %p92
      %p94 = scmp.ne.s32.totalorder %s83, %s84
      %p95 = scmp.eq.s32.totalorder %s35, 0
      %p96 = por %p94, %p95
      %p97 = scmp.ne.s32.totalorder %s83, %s84
      %p98 = scmp.eq.s32.totalorder %s36, 1
      %p99 = por %p97, %p98
      %p101 = scmp.ne.s32.totalorder %s84, %s100
      %p102 = scmp.eq.s32.totalorder %s36, 0
      %p103 = por %p101, %p102
      %s104 = ssub.s32 %s37, %s49
      %p105 = scmp.eq.s32.totalorder %s104, 0
      %s107 = sadd.s32 %s106, 1
      %s108 = scalar_select %p105, %s106, %s107
      %p111 = pneg %p105
      %p112 = scmp.eq.s32.totalorder %s30, 1
      %p113 = por %p111, %p112
      %p114 = scmp.ne.s32.totalorder %s106, %s109
      %p115 = scmp.eq.s32.totalorder %s30, 0
      %p116 = por %p114, %p115
      %p117 = scmp.ne.s32.totalorder %s106, %s109
      %p118 = scmp.eq.s32.totalorder %s35, 1
      %p119 = por %p117, %p118
      %p120 = scmp.ne.s32.totalorder %s109, %s110
      %p121 = scmp.eq.s32.totalorder %s35, 0
      %p122 = por %p120, %p121
      %p123 = scmp.ne.s32.totalorder %s109, %s110
      %p124 = scmp.eq.s32.totalorder %s36, 1
      %p125 = por %p123, %p124
      %p127 = scmp.ne.s32.totalorder %s110, %s126
      %p128 = scmp.eq.s32.totalorder %s36, 0
      %p129 = por %p127, %p128
      %s131 = sadd.s32 %s130, 1
      %p134 = scmp.eq.s32.totalorder %s30, 1
      %p135 = scmp.ne.s32.totalorder %s130, %s132
      %p136 = scmp.eq.s32.totalorder %s30, 0
      %p137 = por %p135, %p136
      %p138 = scmp.ne.s32.totalorder %s130, %s132
      %p139 = scmp.eq.s32.totalorder %s35, 1
      %p140 = por %p138, %p139
      %p141 = scmp.ne.s32.totalorder %s132, %s133
      %p142 = scmp.eq.s32.totalorder %s35, 0
      %p143 = por %p141, %p142
      %p144 = scmp.ne.s32.totalorder %s132, %s133
      %p145 = scmp.eq.s32.totalorder %s36, 1
      %p146 = por %p144, %p145
      %p148 = scmp.ne.s32.totalorder %s133, %s147
      %p149 = scmp.eq.s32.totalorder %s36, 0
      %p150 = por %p148, %p149
      %s152 = sadd.s32 %s151, 1
      %p155 = scmp.eq.s32.totalorder %s30, 1
      %p156 = scmp.ne.s32.totalorder %s151, %s153
      %p157 = scmp.eq.s32.totalorder %s30, 0
      %p158 = por %p156, %p157
      %p159 = scmp.ne.s32.totalorder %s151, %s153
      %p160 = scmp.eq.s32.totalorder %s35, 1
      %p161 = por %p159, %p160
      %p162 = scmp.ne.s32.totalorder %s153, %s154
      %p163 = scmp.eq.s32.totalorder %s35, 0
      %p164 = por %p162, %p163
      %p165 = scmp.ne.s32.totalorder %s153, %s154
      %p166 = scmp.eq.s32.totalorder %s36, 1
      %p167 = por %p165, %p166
      %p169 = scmp.ne.s32.totalorder %s154, %s168
      %p170 = scmp.eq.s32.totalorder %s36, 0
      %p171 = por %p169, %p170
      %s173 = sadd.s32 %s172, 1
      %p176 = scmp.eq.s32.totalorder %s30, 1
      %p177 = scmp.ne.s32.totalorder %s172, %s174
      %p178 = scmp.eq.s32.totalorder %s30, 0
      %p179 = por %p177, %p178
      %p180 = scmp.ne.s32.totalorder %s172, %s174
      %p181 = scmp.eq.s32.totalorder %s35, 1
      %p182 = por %p180, %p181
      %p183 = scmp.ne.s32.totalorder %s174, %s175
      %p184 = scmp.eq.s32.totalorder %s35, 0
      %p185 = por %p183, %p184
      %p186 = scmp.ne.s32.totalorder %s174, %s175
      %p187 = scmp.eq.s32.totalorder %s36, 1
      %p188 = por %p186, %p187
      %p190 = scmp.ne.s32.totalorder %s175, %s189
      %p191 = scmp.eq.s32.totalorder %s36, 0
      %p192 = por %p190, %p191
      %s194 = sadd.s32 %s193, 1
      %p197 = scmp.eq.s32.totalorder %s30, 1
      %p198 = scmp.ne.s32.totalorder %s193, %s195
      %p199 = scmp.eq.s32.totalorder %s30, 0
      %p200 = por %p198, %p199
      %p201 = scmp.ne.s32.totalorder %s193, %s195
      %p202 = scmp.eq.s32.totalorder %s35, 1
      %p203 = por %p201, %p202
      %p204 = scmp.ne.s32.totalorder %s195, %s196
      %p205 = scmp.eq.s32.totalorder %s35, 0
      %p206 = por %p204, %p205
      %p207 = scmp.ne.s32.totalorder %s195, %s196
      %p208 = scmp.eq.s32.totalorder %s36, 1
      %p209 = por %p207, %p208
      %p211 = scmp.ne.s32.totalorder %s196, %s210
      %p212 = scmp.eq.s32.totalorder %s36, 0
      %p213 = por %p211, %p212
      %s215 = sadd.s32 %s214, 1
      %p218 = scmp.eq.s32.totalorder %s30, 1
      %p219 = scmp.ne.s32.totalorder %s214, %s216
      %p220 = scmp.eq.s32.totalorder %s30, 0
      %p221 = por %p219, %p220
      %p222 = scmp.ne.s32.totalorder %s214, %s216
      %p223 = scmp.eq.s32.totalorder %s35, 1
      %p224 = por %p222, %p223
      %p225 = scmp.ne.s32.totalorder %s216, %s217
      %p226 = scmp.eq.s32.totalorder %s35, 0
      %p227 = por %p225, %p226
      %p228 = scmp.ne.s32.totalorder %s216, %s217
      %p229 = scmp.eq.s32.totalorder %s36, 1
      %p230 = por %p228, %p229
      %p232 = scmp.ne.s32.totalorder %s217, %s231
      %p233 = scmp.eq.s32.totalorder %s36, 0
      %p234 = por %p232, %p233
      %s236 = sadd.s32 %s235, 1
      %p239 = scmp.eq.s32.totalorder %s30, 1
      %p240 = scmp.ne.s32.totalorder %s235, %s237
      %p241 = scmp.eq.s32.totalorder %s30, 0
      %p242 = por %p240, %p241
      %p243 = scmp.ne.s32.totalorder %s235, %s237
      %p244 = scmp.eq.s32.totalorder %s35, 1
      %p245 = por %p243, %p244
      %p246 = scmp.ne.s32.totalorder %s237, %s238
      %p247 = scmp.eq.s32.totalorder %s35, 0
      %p248 = por %p246, %p247
      %p249 = scmp.ne.s32.totalorder %s237, %s238
      %p250 = scmp.eq.s32.totalorder %s36, 1
      %p251 = por %p249, %p250
      %p253 = scmp.ne.s32.totalorder %s238, %s252
      %p254 = scmp.eq.s32.totalorder %s36, 0
      %p255 = por %p253, %p254
      %s257 = sadd.s32 %s256, 1
      %p260 = scmp.eq.s32.totalorder %s30, 1
      %p261 = scmp.ne.s32.totalorder %s256, %s258
      %p262 = scmp.eq.s32.totalorder %s30, 0
      %p263 = por %p261, %p262
      %p264 = scmp.ne.s32.totalorder %s256, %s258
      %p265 = scmp.eq.s32.totalorder %s35, 1
      %p266 = por %p264, %p265
      %p267 = scmp.ne.s32.totalorder %s258, %s259
      %p268 = scmp.eq.s32.totalorder %s35, 0
      %p269 = por %p267, %p268
      %p270 = scmp.ne.s32.totalorder %s258, %s259
      %p271 = scmp.eq.s32.totalorder %s36, 1
      %p272 = por %p270, %p271
      %p274 = scmp.ne.s32.totalorder %s259, %s273
      %p275 = scmp.eq.s32.totalorder %s36, 0
      %p276 = por %p274, %p275
      %s278 = sadd.s32 %s277, 1
      %p281 = scmp.eq.s32.totalorder %s30, 1
      %p282 = scmp.ne.s32.totalorder %s277, %s279
      %p283 = scmp.eq.s32.totalorder %s30, 0
      %p284 = por %p282, %p283
      %p285 = scmp.ne.s32.totalorder %s277, %s279
      %p286 = scmp.eq.s32.totalorder %s35, 1
      %p287 = por %p285, %p286
      %p288 = scmp.ne.s32.totalorder %s279, %s280
      %p289 = scmp.eq.s32.totalorder %s35, 0
      %p290 = por %p288, %p289
      %p291 = scmp.ne.s32.totalorder %s279, %s280
      %p292 = scmp.eq.s32.totalorder %s36, 1
      %p293 = por %p291, %p292
      %p295 = scmp.ne.s32.totalorder %s280, %s294
      %p296 = scmp.eq.s32.totalorder %s36, 0
      %p297 = por %p295, %p296
      %s299 = sadd.s32 %s298, 1
      %p302 = scmp.eq.s32.totalorder %s30, 1
      %p303 = scmp.ne.s32.totalorder %s298, %s300
      %p304 = scmp.eq.s32.totalorder %s30, 0
      %p305 = por %p303, %p304
      %p306 = scmp.ne.s32.totalorder %s298, %s300
      %p307 = scmp.eq.s32.totalorder %s35, 1
      %p308 = por %p306, %p307
      %p309 = scmp.ne.s32.totalorder %s300, %s301
      %p310 = scmp.eq.s32.totalorder %s35, 0
      %p311 = por %p309, %p310
      %p312 = scmp.ne.s32.totalorder %s300, %s301
      %p313 = scmp.eq.s32.totalorder %s36, 1
      %p314 = por %p312, %p313
      %p316 = scmp.ne.s32.totalorder %s301, %s315
      %p317 = scmp.eq.s32.totalorder %s36, 0
      %p318 = por %p316, %p317
      %s319 = ssub.s32 %s38, %s45
      %s320 = ssub.s32 %s37, %s49
      %s321 = sor.u32 %s319, %s320
      %p322 = scmp.eq.s32.totalorder %s321, 0
      %s324 = sadd.s32 %s323, 1
      %s325 = scalar_select %p322, %s323, %s324
      %p328 = pneg %p322
      %p329 = scmp.eq.s32.totalorder %s30, 1
      %p330 = por %p328, %p329
      %p331 = scmp.ne.s32.totalorder %s323, %s326
      %p332 = scmp.eq.s32.totalorder %s30, 0
      %p333 = por %p331, %p332
      %p334 = scmp.ne.s32.totalorder %s323, %s326
      %p335 = scmp.eq.s32.totalorder %s35, 1
      %p336 = por %p334, %p335
      %p337 = scmp.ne.s32.totalorder %s326, %s327
      %p338 = scmp.eq.s32.totalorder %s35, 0
      %p339 = por %p337, %p338
      %p340 = scmp.ne.s32.totalorder %s326, %s327
      %p341 = scmp.eq.s32.totalorder %s36, 1
      %p342 = por %p340, %p341
      %p344 = scmp.ne.s32.totalorder %s327, %s343
      %p345 = scmp.eq.s32.totalorder %s36, 0
      %p346 = por %p344, %p345
      %p347 = scmp.le.s32.totalorder 1, %s30
      %p348 = scmp.lt.s32.totalorder %s30, 3
      %p349 = pnand %p347, %p348
      %p350 = pneg %p349
      // Predicated region
      $region9: #{tpu_custom_call.1} parent=5 // pred_check
        _
      $region10: #{tpu_custom_call.1} parent=5 // pred_check_branch
        %352 = sbr.rel (%p349) target = $region12
      $region11: #{tpu_custom_call.1} parent=5 // pred_region
        %s353 = ssub.s32 %s30, 1
        // Predicated region
        $region13: #{tpu_custom_call.1} parent=11 // pred_check
          %p354 = pneg %p143
        $region14: #{tpu_custom_call.1} parent=11 // pred_check_branch
          %356 = sbr.rel (%p354) target = $region16
        $region15: #{tpu_custom_call.1} parent=11 // pred_region
          %358 = vsyncadd [#allocation10], 0
          %s359 = sshll.u32 %s3, 4
          %s360 = int_to_ptr.hbm [resolvable:$true] %s359
          %s361 = sshll.u32 [#allocation9], 4
          %s362 = int_to_ptr.vmem [resolvable:$true] %s361
          %367 = dma.hbm_to_vmem [thread:$0]  %s360, 2048, %s362, [#allocation10], 128, 128, 8
        $region16: #{tpu_custom_call.1} parent=11 // pred_fallthru
          _
        // Predicated region
        $region17: #{tpu_custom_call.1} parent=11 // pred_check
          %p368 = pneg %p164
        $region18: #{tpu_custom_call.1} parent=11 // pred_check_branch
          %370 = sbr.rel (%p368) target = $region20
        $region19: #{tpu_custom_call.1} parent=11 // pred_region
          _
        $region20: #{tpu_custom_call.1} parent=11 // pred_fallthru
          _
        // Predicated region
        $region21: #{tpu_custom_call.1} parent=11 // pred_check
          %p371 = pneg %p185
        $region22: #{tpu_custom_call.1} parent=11 // pred_check_branch
          %373 = sbr.rel (%p371) target = $region24
        $region23: #{tpu_custom_call.1} parent=11 // pred_region
          %375 = vsyncadd [#allocation10], 0
          %s376 = sshll.u32 %s5, 4
          %s377 = int_to_ptr.hbm [resolvable:$true] %s376
          %s378 = sshll.u32 [#allocation11], 4
          %s379 = int_to_ptr.vmem [resolvable:$true] %s378
          %384 = dma.hbm_to_vmem [thread:$0]  %s377, 2048, %s379, [#allocation10], 128, 128, 8
        $region24: #{tpu_custom_call.1} parent=11 // pred_fallthru
          _
        // Predicated region
        $region25: #{tpu_custom_call.1} parent=11 // pred_check
          %p385 = pneg %p206
        $region26: #{tpu_custom_call.1} parent=11 // pred_check_branch
          %387 = sbr.rel (%p385) target = $region28
        $region27: #{tpu_custom_call.1} parent=11 // pred_region
          _
        $region28: #{tpu_custom_call.1} parent=11 // pred_fallthru
          _
        // Predicated region
        $region29: #{tpu_custom_call.1} parent=11 // pred_check
          %p388 = pneg %p227
        $region30: #{tpu_custom_call.1} parent=11 // pred_check_branch
          %390 = sbr.rel (%p388) target = $region32
        $region31: #{tpu_custom_call.1} parent=11 // pred_region
          %392 = vsyncadd [#allocation13], 0
          %s393 = sshll.u32 %s7, 4
          %s394 = int_to_ptr.hbm [resolvable:$true] %s393
          %s395 = sshll.u32 [#allocation12], 4
          %s396 = int_to_ptr.vmem [resolvable:$true] %s395
          %401 = dma.hbm_to_vmem [thread:$0]  %s394, 2048, %s396, [#allocation13], 128, 128, 8
        $region32: #{tpu_custom_call.1} parent=11 // pred_fallthru
          _
        // Predicated region
        $region33: #{tpu_custom_call.1} parent=11 // pred_check
          %p402 = pneg %p248
        $region34: #{tpu_custom_call.1} parent=11 // pred_check_branch
          %404 = sbr.rel (%p402) target = $region36
        $region35: #{tpu_custom_call.1} parent=11 // pred_region
          _
        $region36: #{tpu_custom_call.1} parent=11 // pred_fallthru
          _
        // Predicated region
        $region37: #{tpu_custom_call.1} parent=11 // pred_check
          %p405 = pneg %p269
        $region38: #{tpu_custom_call.1} parent=11 // pred_check_branch
          %407 = sbr.rel (%p405) target = $region40
        $region39: #{tpu_custom_call.1} parent=11 // pred_region
          %409 = vsyncadd [#allocation13], 0
          %s410 = sshll.u32 %s9, 4
          %s411 = int_to_ptr.hbm [resolvable:$true] %s410
          %s412 = sshll.u32 [#allocation14], 4
          %s413 = int_to_ptr.vmem [resolvable:$true] %s412
          %418 = dma.hbm_to_vmem [thread:$0]  %s411, 2048, %s413, [#allocation13], 128, 128, 8
        $region40: #{tpu_custom_call.1} parent=11 // pred_fallthru
          _
        // Predicated region
        $region41: #{tpu_custom_call.1} parent=11 // pred_check
          %p419 = pneg %p290
        $region42: #{tpu_custom_call.1} parent=11 // pred_check_branch
          %421 = sbr.rel (%p419) target = $region44
        $region43: #{tpu_custom_call.1} parent=11 // pred_region
          _
        $region44: #{tpu_custom_call.1} parent=11 // pred_fallthru
          _
        // Predicated region
        $region45: #{tpu_custom_call.1} parent=11 // pred_check
          %p422 = pneg %p311
        $region46: #{tpu_custom_call.1} parent=11 // pred_check_branch
          %424 = sbr.rel (%p422) target = $region48
        $region47: #{tpu_custom_call.1} parent=11 // pred_region
          %426 = vsyncadd [#allocation16], 0
          %s427 = sshll.u32 %s11, 4
          %s428 = int_to_ptr.hbm [resolvable:$true] %s427
          %s429 = sshll.u32 [#allocation15], 4
          %s430 = int_to_ptr.vmem [resolvable:$true] %s429
          %435 = dma.hbm_to_vmem [thread:$0]  %s428, 2048, %s430, [#allocation16], 128, 128, 8
        $region48: #{tpu_custom_call.1} parent=11 // pred_fallthru
          _
      $region12: #{tpu_custom_call.1} parent=5 // pred_fallthru
        _
      %p436 = scmp.lt.s32.totalorder %s30, 2
      // Predicated region
      $region49: #{tpu_custom_call.1} parent=5 // pred_check
        %p437 = pneg %p436
      $region50: #{tpu_custom_call.1} parent=5 // pred_check_branch
        %439 = sbr.rel (%p437) target = $region52
      $region51: #{tpu_custom_call.1} parent=5 // pred_region
        // Predicated region
        $region53: #{tpu_custom_call.1} parent=51 // pred_check
          %p440 = pneg %p64
        $region54: #{tpu_custom_call.1} parent=51 // pred_check_branch
          %442 = sbr.rel (%p440) target = $region56
        $region55: #{tpu_custom_call.1} parent=51 // pred_region
          %s443 = sand.u32 %s54, 1
          %s444 = scalar_lea.sflag [#allocation4], %s443
          %s445 = sand.u32 %s54, 1
          %s446 = smul.addr %s445, 8
          %s447 = scalar_lea.vmem [#allocation3], %s446
          %449 = vsyncadd %s444, 0
          %s450 = smul.addr %s38, 2
          %s451 = sadd.s32 %s37, %s450
          %s452 = smul.addr %s451, 8
          %s453 = scalar_lea.hbm %s0, %s452
          %s455 = sshll.u32 %s453, 4
          %s456 = int_to_ptr.hbm [resolvable:$true] %s455
          %s457 = sshll.u32 %s447, 4
          %s458 = int_to_ptr.vmem [resolvable:$true] %s457
          %460 = dma.hbm_to_vmem [thread:$0]  %s456, 128, %s458, %s444
        $region56: #{tpu_custom_call.1} parent=51 // pred_fallthru
          _
        // Predicated region
        $region57: #{tpu_custom_call.1} parent=51 // pred_check
          %p461 = pneg %p90
        $region58: #{tpu_custom_call.1} parent=51 // pred_check_branch
          %463 = sbr.rel (%p461) target = $region60
        $region59: #{tpu_custom_call.1} parent=51 // pred_region
          %s464 = sand.u32 %s30, 1
          %s465 = scalar_lea.sflag [#allocation7], %s464
          %s466 = sand.u32 %s80, 1
          %s467 = smul.addr %s466, 8
          %s468 = scalar_lea.vmem [#allocation6], %s467
          %470 = vsyncadd %s465, 0
          %s471 = smul.addr %s37, 8
          %s472 = scalar_lea.hbm %s1, %s471
          %s474 = sshll.u32 %s472, 4
          %s475 = int_to_ptr.hbm [resolvable:$true] %s474
          %s476 = sshll.u32 %s468, 4
          %s477 = int_to_ptr.vmem [resolvable:$true] %s476
          %479 = dma.hbm_to_vmem [thread:$0]  %s475, 128, %s477, %s465
        $region60: #{tpu_custom_call.1} parent=51 // pred_fallthru
          _
        // Predicated region
        $region61: #{tpu_custom_call.1} parent=51 // pred_check
          %p480 = pneg %p116
        $region62: #{tpu_custom_call.1} parent=51 // pred_check_branch
          %482 = sbr.rel (%p480) target = $region64
        $region63: #{tpu_custom_call.1} parent=51 // pred_region
          %s483 = sand.u32 %s30, 1
          %s484 = scalar_lea.sflag [#allocation7], %s483
          %s485 = sand.u32 %s106, 1
          %s486 = smul.addr %s485, 8
          %s487 = scalar_lea.vmem [#allocation8], %s486
          %489 = vsyncadd %s484, 0
          %s490 = smul.addr %s37, 8
          %s491 = scalar_lea.hbm %s2, %s490
          %s493 = sshll.u32 %s491, 4
          %s494 = int_to_ptr.hbm [resolvable:$true] %s493
          %s495 = sshll.u32 %s487, 4
          %s496 = int_to_ptr.vmem [resolvable:$true] %s495
          %498 = dma.hbm_to_vmem [thread:$0]  %s494, 128, %s496, %s484
        $region64: #{tpu_custom_call.1} parent=51 // pred_fallthru
          _
      $region52: #{tpu_custom_call.1} parent=5 // pred_fallthru
        _
      %p499 = scmp.le.s32.totalorder 1, %s30
      %p500 = scmp.lt.s32.totalorder %s30, 3
      %p501 = pnand %p499, %p500
      %p502 = pneg %p501
      // Predicated region
      $region65: #{tpu_custom_call.1} parent=5 // pred_check
        _
      $region66: #{tpu_custom_call.1} parent=5 // pred_check_branch
        %504 = sbr.rel (%p501) target = $region68
      $region67: #{tpu_custom_call.1} parent=5 // pred_region
        %s505 = ssub.s32 %s30, 1
        %s506 = sand.u32 %s57, 1
        %s507 = scalar_lea.sflag [#allocation4], %s506
        %s508 = sand.u32 %s57, 1
        %s509 = smul.addr %s508, 8
        %s510 = scalar_lea.vmem [#allocation3], %s509
        // Predicated region
        $region69: #{tpu_custom_call.1} parent=67 // pred_check
          %p511 = pneg %p70
        $region70: #{tpu_custom_call.1} parent=67 // pred_check_branch
          %513 = sbr.rel (%p511) target = $region72
        $region71: #{tpu_custom_call.1} parent=67 // pred_region
          %515 = dma.done %s507, 128
        $region72: #{tpu_custom_call.1} parent=67 // pred_fallthru
          _
        %s516 = sand.u32 %s35, 1
        %s517 = scalar_lea.sflag [#allocation7], %s516
        %s518 = sand.u32 %s83, 1
        %s519 = smul.addr %s518, 8
        %s520 = scalar_lea.vmem [#allocation6], %s519
        // Predicated region
        $region73: #{tpu_custom_call.1} parent=67 // pred_check
          %p521 = pneg %p96
        $region74: #{tpu_custom_call.1} parent=67 // pred_check_branch
          %523 = sbr.rel (%p521) target = $region76
        $region75: #{tpu_custom_call.1} parent=67 // pred_region
          %525 = dma.done %s517, 128
        $region76: #{tpu_custom_call.1} parent=67 // pred_fallthru
          _
        %s526 = sand.u32 %s35, 1
        %s527 = scalar_lea.sflag [#allocation7], %s526
        %s528 = sand.u32 %s109, 1
        %s529 = smul.addr %s528, 8
        %s530 = scalar_lea.vmem [#allocation8], %s529
        // Predicated region
        $region77: #{tpu_custom_call.1} parent=67 // pred_check
          %p531 = pneg %p122
        $region78: #{tpu_custom_call.1} parent=67 // pred_check_branch
          %533 = sbr.rel (%p531) target = $region80
        $region79: #{tpu_custom_call.1} parent=67 // pred_region
          %535 = dma.done %s527, 128
        $region80: #{tpu_custom_call.1} parent=67 // pred_fallthru
          _
        // Predicated region
        $region81: #{tpu_custom_call.1} parent=67 // pred_check
          %p536 = pneg %p143
        $region82: #{tpu_custom_call.1} parent=67 // pred_check_branch
          %538 = sbr.rel (%p536) target = $region84
        $region83: #{tpu_custom_call.1} parent=67 // pred_region
          %540 = dma.done [#allocation10], 2048
        $region84: #{tpu_custom_call.1} parent=67 // pred_fallthru
          _
        // Predicated region
        $region85: #{tpu_custom_call.1} parent=67 // pred_check
          %p541 = pneg %p185
        $region86: #{tpu_custom_call.1} parent=67 // pred_check_branch
          %543 = sbr.rel (%p541) target = $region88
        $region87: #{tpu_custom_call.1} parent=67 // pred_region
          %545 = dma.done [#allocation10], 2048
        $region88: #{tpu_custom_call.1} parent=67 // pred_fallthru
          _
        // Predicated region
        $region89: #{tpu_custom_call.1} parent=67 // pred_check
          %p546 = pneg %p227
        $region90: #{tpu_custom_call.1} parent=67 // pred_check_branch
          %548 = sbr.rel (%p546) target = $region92
        $region91: #{tpu_custom_call.1} parent=67 // pred_region
          %550 = dma.done [#allocation13], 2048
        $region92: #{tpu_custom_call.1} parent=67 // pred_fallthru
          _
        // Predicated region
        $region93: #{tpu_custom_call.1} parent=67 // pred_check
          %p551 = pneg %p269
        $region94: #{tpu_custom_call.1} parent=67 // pred_check_branch
          %553 = sbr.rel (%p551) target = $region96
        $region95: #{tpu_custom_call.1} parent=67 // pred_region
          %555 = dma.done [#allocation13], 2048
        $region96: #{tpu_custom_call.1} parent=67 // pred_fallthru
          _
        // Predicated region
        $region97: #{tpu_custom_call.1} parent=67 // pred_check
          %p556 = pneg %p311
        $region98: #{tpu_custom_call.1} parent=67 // pred_check_branch
          %558 = sbr.rel (%p556) target = $region100
        $region99: #{tpu_custom_call.1} parent=67 // pred_region
          %560 = dma.done [#allocation16], 2048
        $region100: #{tpu_custom_call.1} parent=67 // pred_fallthru
          _
        %s561 = sand.u32 %s57, 1
        %s562 = scalar_lea.sflag [#allocation4], %s561
        %s563 = sand.u32 %s57, 1
        %s564 = smul.addr %s563, 8
        %s565 = scalar_lea.vmem [#allocation3], %s564
        %p566 = pneg %p70
        %p567 = pneg %p67
        %s568 = sand.u32 %s35, 1
        %s569 = scalar_lea.sflag [#allocation7], %s568
        %s570 = sand.u32 %s83, 1
        %s571 = smul.addr %s570, 8
        %s572 = scalar_lea.vmem [#allocation6], %s571
        %p573 = pneg %p96
        %p574 = pneg %p93
        %s575 = sand.u32 %s35, 1
        %s576 = scalar_lea.sflag [#allocation7], %s575
        %s577 = sand.u32 %s109, 1
        %s578 = smul.addr %s577, 8
        %s579 = scalar_lea.vmem [#allocation8], %s578
        %p580 = pneg %p122
        %p581 = pneg %p119
        %p582 = pneg %p143
        %p583 = pneg %p140
        %p584 = pneg %p164
        %p585 = pneg %p161
        %p586 = pneg %p185
        %p587 = pneg %p182
        %p588 = pneg %p206
        %p589 = pneg %p203
        %p590 = pneg %p227
        %p591 = pneg %p224
        %p592 = pneg %p248
        %p593 = pneg %p245
        %p594 = pneg %p269
        %p595 = pneg %p266
        %p596 = pneg %p290
        %p597 = pneg %p287
        %p598 = pneg %p311
        %p599 = pneg %p308
        %p600 = pneg %p339
        %p601 = pneg %p336
        %s602 = sand.u32 %s326, 1
        %s603 = scalar_lea.sflag [#allocation5], %s602
        %s604 = sand.u32 %s326, 1
        %s605 = smul.addr %s604, 8
        %s606 = scalar_lea.vmem [#allocation17], %s605
        %p607 = scmp.eq.s32.totalorder %s40, 0
        // Predicated region
        $region101: #{tpu_custom_call.1} parent=67 // pred_check
          %p608 = pneg %p607
        $region102: #{tpu_custom_call.1} parent=67 // pred_check_branch
          %610 = sbr.rel (%p608) target = $region104
        $region103: #{tpu_custom_call.1} parent=67 // pred_region
          %v611 = vld [vmem:[%s520] sm:$0xff]
          %v612 = vld [vmem:[#allocation11] sm:$0xff]
          %v613 = vld [vmem:[#allocation11 + $0x8] sm:$0xff]
          %v614 = vld [vmem:[#allocation11 + $0x10] sm:$0xff]
          %v615 = vld [vmem:[#allocation11 + $0x18] sm:$0xff]
          %v616 = vld [vmem:[#allocation11 + $0x20] sm:$0xff]
          %v617 = vld [vmem:[#allocation11 + $0x28] sm:$0xff]
          %v618 = vld [vmem:[#allocation11 + $0x30] sm:$0xff]
          %v619 = vld [vmem:[#allocation11 + $0x38] sm:$0xff]
          %v620 = vld [vmem:[#allocation11 + $0x40] sm:$0xff]
          %v621 = vld [vmem:[#allocation11 + $0x48] sm:$0xff]
          %v622 = vld [vmem:[#allocation11 + $0x50] sm:$0xff]
          %v623 = vld [vmem:[#allocation11 + $0x58] sm:$0xff]
          %v624 = vld [vmem:[#allocation11 + $0x60] sm:$0xff]
          %v625 = vld [vmem:[#allocation11 + $0x68] sm:$0xff]
          %v626 = vld [vmem:[#allocation11 + $0x70] sm:$0xff]
          %v627 = vld [vmem:[#allocation11 + $0x78] sm:$0xff]
          %v628 = vld [vmem:[%s6] sm:$0x1]
          %v630 = vperm.slane %v628, 0
          %632 = vmatpush.msra.mxu0 %v627
          %633 = vmatpush.msra.mxu0 %v626
          %634 = vmatpush.msra.mxu0 %v625
          %635 = vmatpush.msra.mxu0 %v624
          %636 = vmatpush.msra.mxu0 %v623
          %637 = vmatpush.msra.mxu0 %v622
          %638 = vmatpush.msra.mxu0 %v621
          %639 = vmatpush.msra.mxu0 %v620
          %640 = vmatpush.msra.mxu0 %v619
          %641 = vmatpush.msra.mxu0 %v618
          %642 = vmatpush.msra.mxu0 %v617
          %643 = vmatpush.msra.mxu0 %v616
          %644 = vmatpush.msra.mxu0 %v615
          %645 = vmatpush.msra.mxu0 %v614
          %646 = vmatpush.msra.mxu0 %v613
          %647 = vmatpush.msra.mxu0 %v612
          %648 = vmatmul.f32.gmra.mxu0 %v611
          %v649 = vpop.f32.mrf.mxu0
          %v650 = vadd.f32 %v630, %v649
          %651 = vdwg.mxu0
          %v652 = vld [vmem:[%s530] sm:$0xff]
          %v653 = vld [vmem:[#allocation12] sm:$0xff]
          %v654 = vld [vmem:[#allocation12 + $0x8] sm:$0xff]
          %v655 = vld [vmem:[#allocation12 + $0x10] sm:$0xff]
          %v656 = vld [vmem:[#allocation12 + $0x18] sm:$0xff]
          %v657 = vld [vmem:[#allocation12 + $0x20] sm:$0xff]
          %v658 = vld [vmem:[#allocation12 + $0x28] sm:$0xff]
          %v659 = vld [vmem:[#allocation12 + $0x30] sm:$0xff]
          %v660 = vld [vmem:[#allocation12 + $0x38] sm:$0xff]
          %v661 = vld [vmem:[#allocation12 + $0x40] sm:$0xff]
          %v662 = vld [vmem:[#allocation12 + $0x48] sm:$0xff]
          %v663 = vld [vmem:[#allocation12 + $0x50] sm:$0xff]
          %v664 = vld [vmem:[#allocation12 + $0x58] sm:$0xff]
          %v665 = vld [vmem:[#allocation12 + $0x60] sm:$0xff]
          %v666 = vld [vmem:[#allocation12 + $0x68] sm:$0xff]
          %v667 = vld [vmem:[#allocation12 + $0x70] sm:$0xff]
          %v668 = vld [vmem:[#allocation12 + $0x78] sm:$0xff]
          %v669 = vld [vmem:[%s8] sm:$0x1]
          %v671 = vperm.slane %v669, 0
          %673 = vmatpush.msra.mxu0 %v668
          %674 = vmatpush.msra.mxu0 %v667
          %675 = vmatpush.msra.mxu0 %v666
          %676 = vmatpush.msra.mxu0 %v665
          %677 = vmatpush.msra.mxu0 %v664
          %678 = vmatpush.msra.mxu0 %v663
          %679 = vmatpush.msra.mxu0 %v662
          %680 = vmatpush.msra.mxu0 %v661
          %681 = vmatpush.msra.mxu0 %v660
          %682 = vmatpush.msra.mxu0 %v659
          %683 = vmatpush.msra.mxu0 %v658
          %684 = vmatpush.msra.mxu0 %v657
          %685 = vmatpush.msra.mxu0 %v656
          %686 = vmatpush.msra.mxu0 %v655
          %687 = vmatpush.msra.mxu0 %v654
          %688 = vmatpush.msra.mxu0 %v653
          %689 = vmatmul.f32.gmra.mxu0 %v652
          %v690 = vpop.f32.mrf.mxu0
          %v691 = vadd.f32 %v671, %v690
          %692 = vdwg.mxu0
          %v693 = vrot.slane %v650, 4
          %v694 = vmax.f32 %v650, %v693
          %v695 = vrot.slane %v694, 2
          %v696 = vmax.f32 %v694, %v695
          %v697 = vrot.slane %v696, 1
          %v698 = vmax.f32 %v696, %v697
          %v699 = vsub.f32 %v650, %v698
          %v700 = vmul.f32 %v699, 1.442695
          %v701 = vpow.pop %v700
          %v702 = vrot.slane %v701, 4
          %v703 = vadd.f32 %v701, %v702
          %v704 = vrot.slane %v703, 2
          %v705 = vadd.f32 %v703, %v704
          %v706 = vrot.slane %v705, 1
          %v707 = vadd.f32 %v705, %v706
          %v708 = vrcp.pop %v707
          %v709 = vmul.f32 %v701, %v708
          %710 = vxpose.xlu0.b32.start [1/16] %v709, 128
          %711 = vxpose.xlu0.b32.cont [2/16] 0.0, 128
          %712 = vxpose.xlu0.b32.cont [3/16] 0.0, 128
          %713 = vxpose.xlu0.b32.cont [4/16] 0.0, 128
          %714 = vxpose.xlu0.b32.cont [5/16] 0.0, 128
          %715 = vxpose.xlu0.b32.cont [6/16] 0.0, 128
          %716 = vxpose.xlu0.b32.cont [7/16] 0.0, 128
          %717 = vxpose.xlu0.b32.cont [8/16] 0.0, 128
          %718 = vxpose.xlu0.b32.cont [9/16] 0.0, 128
          %719 = vxpose.xlu0.b32.cont [10/16] 0.0, 128
          %720 = vxpose.xlu0.b32.cont [11/16] 0.0, 128
          %721 = vxpose.xlu0.b32.cont [12/16] 0.0, 128
          %722 = vxpose.xlu0.b32.cont [13/16] 0.0, 128
          %723 = vxpose.xlu0.b32.cont [14/16] 0.0, 128
          %724 = vxpose.xlu0.b32.cont [15/16] 0.0, 128
          %725 = vxpose.xlu0.b32.end [16/16] 0.0, 128
          %v726 = vpop.trf.xlu0
          %v727 = vpop.trf.xlu0
          %v728 = vpop.trf.xlu0
          %v729 = vpop.trf.xlu0
          %v730 = vpop.trf.xlu0
          %v731 = vpop.trf.xlu0
          %v732 = vpop.trf.xlu0
          %v733 = vpop.trf.xlu0
          %v734 = vpop.trf.xlu0
          %v735 = vpop.trf.xlu0
          %v736 = vpop.trf.xlu0
          %v737 = vpop.trf.xlu0
          %v738 = vpop.trf.xlu0
          %v739 = vpop.trf.xlu0
          %v740 = vpop.trf.xlu0
          %v741 = vpop.trf.xlu0
          %vm742 = vcmask 64512
          %v744 = vsel %vm742, %v726, 0
          %v747 = vsel %vm742, %v727, 0
          %v750 = vsel %vm742, %v728, 0
          %v753 = vsel %vm742, %v729, 0
          %v756 = vsel %vm742, %v730, 0
          %v759 = vsel %vm742, %v731, 0
          %v762 = vsel %vm742, %v732, 0
          %v765 = vsel %vm742, %v733, 0
          %v768 = vsel %vm742, %v734, 0
          %v771 = vsel %vm742, %v735, 0
          %v774 = vsel %vm742, %v736, 0
          %v777 = vsel %vm742, %v737, 0
          %v780 = vsel %vm742, %v738, 0
          %v783 = vsel %vm742, %v739, 0
          %v786 = vsel %vm742, %v740, 0
          %v789 = vsel %vm742, %v741, 0
          %791 = vmatpush.msra.mxu0 0.0
          %792 = vmatpush.msra.mxu0 0.0
          %793 = vmatpush.msra.mxu0 0.0
          %794 = vmatpush.msra.mxu0 0.0
          %795 = vmatpush.msra.mxu0 0.0
          %796 = vmatpush.msra.mxu0 0.0
          %797 = vmatpush.msra.mxu0 0.0
          %798 = vmatpush.msra.mxu0 0.0
          %799 = vmatpush.msra.mxu0 0.0
          %800 = vmatpush.msra.mxu0 0.0
          %801 = vmatpush.msra.mxu0 0.0
          %802 = vmatpush.msra.mxu0 0.0
          %803 = vmatpush.msra.mxu0 0.0
          %804 = vmatpush.msra.mxu0 0.0
          %805 = vmatpush.msra.mxu0 0.0
          %806 = vmatpush.msra.mxu0 %v691
          %807 = vmatmul.f32.gmra.mxu0 %v744
          %v808 = vpop.f32.mrf.mxu0
          %v809 = vadd.f32 0.0, %v808
          %810 = vmatmul.f32.gmra.mxu0 %v747
          %v811 = vpop.f32.mrf.mxu0
          %v812 = vadd.f32 0.0, %v811
          %813 = vmatmul.f32.gmra.mxu0 %v750
          %v814 = vpop.f32.mrf.mxu0
          %v815 = vadd.f32 0.0, %v814
          %816 = vmatmul.f32.gmra.mxu0 %v753
          %v817 = vpop.f32.mrf.mxu0
          %v818 = vadd.f32 0.0, %v817
          %819 = vmatmul.f32.gmra.mxu0 %v756
          %v820 = vpop.f32.mrf.mxu0
          %v821 = vadd.f32 0.0, %v820
          %822 = vmatmul.f32.gmra.mxu0 %v759
          %v823 = vpop.f32.mrf.mxu0
          %v824 = vadd.f32 0.0, %v823
          %825 = vmatmul.f32.gmra.mxu0 %v762
          %v826 = vpop.f32.mrf.mxu0
          %v827 = vadd.f32 0.0, %v826
          %828 = vmatmul.f32.gmra.mxu0 %v765
          %v829 = vpop.f32.mrf.mxu0
          %v830 = vadd.f32 0.0, %v829
          %831 = vmatmul.f32.gmra.mxu0 %v768
          %v832 = vpop.f32.mrf.mxu0
          %v833 = vadd.f32 0.0, %v832
          %834 = vmatmul.f32.gmra.mxu0 %v771
          %v835 = vpop.f32.mrf.mxu0
          %v836 = vadd.f32 0.0, %v835
          %837 = vmatmul.f32.gmra.mxu0 %v774
          %v838 = vpop.f32.mrf.mxu0
          %v839 = vadd.f32 0.0, %v838
          %840 = vmatmul.f32.gmra.mxu0 %v777
          %v841 = vpop.f32.mrf.mxu0
          %v842 = vadd.f32 0.0, %v841
          %843 = vmatmul.f32.gmra.mxu0 %v780
          %v844 = vpop.f32.mrf.mxu0
          %v845 = vadd.f32 0.0, %v844
          %846 = vmatmul.f32.gmra.mxu0 %v783
          %v847 = vpop.f32.mrf.mxu0
          %v848 = vadd.f32 0.0, %v847
          %849 = vmatmul.f32.gmra.mxu0 %v786
          %v850 = vpop.f32.mrf.mxu0
          %v851 = vadd.f32 0.0, %v850
          %852 = vmatmul.f32.gmra.mxu0 %v789
          %v853 = vpop.f32.mrf.mxu0
          %v854 = vadd.f32 0.0, %v853
          %855 = vdwg.mxu0
          %v856 = vld [vmem:[#allocation15] sm:$0xff]
          %v857 = vld [vmem:[#allocation15 + $0x8] sm:$0xff]
          %v858 = vld [vmem:[#allocation15 + $0x10] sm:$0xff]
          %v859 = vld [vmem:[#allocation15 + $0x18] sm:$0xff]
          %v860 = vld [vmem:[#allocation15 + $0x20] sm:$0xff]
          %v861 = vld [vmem:[#allocation15 + $0x28] sm:$0xff]
          %v862 = vld [vmem:[#allocation15 + $0x30] sm:$0xff]
          %v863 = vld [vmem:[#allocation15 + $0x38] sm:$0xff]
          %v864 = vld [vmem:[#allocation15 + $0x40] sm:$0xff]
          %v865 = vld [vmem:[#allocation15 + $0x48] sm:$0xff]
          %v866 = vld [vmem:[#allocation15 + $0x50] sm:$0xff]
          %v867 = vld [vmem:[#allocation15 + $0x58] sm:$0xff]
          %v868 = vld [vmem:[#allocation15 + $0x60] sm:$0xff]
          %v869 = vld [vmem:[#allocation15 + $0x68] sm:$0xff]
          %v870 = vld [vmem:[#allocation15 + $0x70] sm:$0xff]
          %v871 = vld [vmem:[#allocation15 + $0x78] sm:$0xff]
          %v872 = vmul.f32 %v809, %v856
          %v873 = vmul.f32 %v812, %v857
          %v874 = vmul.f32 %v815, %v858
          %v875 = vmul.f32 %v818, %v859
          %v876 = vmul.f32 %v821, %v860
          %v877 = vmul.f32 %v824, %v861
          %v878 = vmul.f32 %v827, %v862
          %v879 = vmul.f32 %v830, %v863
          %v880 = vmul.f32 %v833, %v864
          %v881 = vmul.f32 %v836, %v865
          %v882 = vmul.f32 %v839, %v866
          %v883 = vmul.f32 %v842, %v867
          %v884 = vmul.f32 %v845, %v868
          %v885 = vmul.f32 %v848, %v869
          %v886 = vmul.f32 %v851, %v870
          %v887 = vmul.f32 %v854, %v871
          %888 = vst [vmem:[#allocation2] sm:$0xff] %v872
          %889 = vst [vmem:[#allocation2 + $0x8] sm:$0xff] %v873
          %890 = vst [vmem:[#allocation2 + $0x10] sm:$0xff] %v874
          %891 = vst [vmem:[#allocation2 + $0x18] sm:$0xff] %v875
          %892 = vst [vmem:[#allocation2 + $0x20] sm:$0xff] %v876
          %893 = vst [vmem:[#allocation2 + $0x28] sm:$0xff] %v877
          %894 = vst [vmem:[#allocation2 + $0x30] sm:$0xff] %v878
          %895 = vst [vmem:[#allocation2 + $0x38] sm:$0xff] %v879
          %896 = vst [vmem:[#allocation2 + $0x40] sm:$0xff] %v880
          %897 = vst [vmem:[#allocation2 + $0x48] sm:$0xff] %v881
          %898 = vst [vmem:[#allocation2 + $0x50] sm:$0xff] %v882
          %899 = vst [vmem:[#allocation2 + $0x58] sm:$0xff] %v883
          %900 = vst [vmem:[#allocation2 + $0x60] sm:$0xff] %v884
          %901 = vst [vmem:[#allocation2 + $0x68] sm:$0xff] %v885
          %902 = vst [vmem:[#allocation2 + $0x70] sm:$0xff] %v886
          %903 = vst [vmem:[#allocation2 + $0x78] sm:$0xff] %v887
        $region104: #{tpu_custom_call.1} parent=67 // pred_fallthru
          _
        %v904 = vld [vmem:[%s510] sm:$0xff]
        %v905 = vld [vmem:[#allocation9] sm:$0xff]
        %v906 = vld [vmem:[#allocation9 + $0x8] sm:$0xff]
        %v907 = vld [vmem:[#allocation9 + $0x10] sm:$0xff]
        %v908 = vld [vmem:[#allocation9 + $0x18] sm:$0xff]
        %v909 = vld [vmem:[#allocation9 + $0x20] sm:$0xff]
        %v910 = vld [vmem:[#allocation9 + $0x28] sm:$0xff]
        %v911 = vld [vmem:[#allocation9 + $0x30] sm:$0xff]
        %v912 = vld [vmem:[#allocation9 + $0x38] sm:$0xff]
        %v913 = vld [vmem:[#allocation9 + $0x40] sm:$0xff]
        %v914 = vld [vmem:[#allocation9 + $0x48] sm:$0xff]
        %v915 = vld [vmem:[#allocation9 + $0x50] sm:$0xff]
        %v916 = vld [vmem:[#allocation9 + $0x58] sm:$0xff]
        %v917 = vld [vmem:[#allocation9 + $0x60] sm:$0xff]
        %v918 = vld [vmem:[#allocation9 + $0x68] sm:$0xff]
        %v919 = vld [vmem:[#allocation9 + $0x70] sm:$0xff]
        %v920 = vld [vmem:[#allocation9 + $0x78] sm:$0xff]
        %v921 = vld [vmem:[%s4] sm:$0x1]
        %v923 = vperm.slane %v921, 0
        %925 = vmatpush.msra.mxu0 %v920
        %926 = vmatpush.msra.mxu0 %v919
        %927 = vmatpush.msra.mxu0 %v918
        %928 = vmatpush.msra.mxu0 %v917
        %929 = vmatpush.msra.mxu0 %v916
        %930 = vmatpush.msra.mxu0 %v915
        %931 = vmatpush.msra.mxu0 %v914
        %932 = vmatpush.msra.mxu0 %v913
        %933 = vmatpush.msra.mxu0 %v912
        %934 = vmatpush.msra.mxu0 %v911
        %935 = vmatpush.msra.mxu0 %v910
        %936 = vmatpush.msra.mxu0 %v909
        %937 = vmatpush.msra.mxu0 %v908
        %938 = vmatpush.msra.mxu0 %v907
        %939 = vmatpush.msra.mxu0 %v906
        %940 = vmatpush.msra.mxu0 %v905
        %941 = vmatmul.f32.gmra.mxu0 %v904
        %v942 = vpop.f32.mrf.mxu0
        %v943 = vadd.f32 %v923, %v942
        %944 = vdwg.mxu0
        %945 = vmax.xlane.f32.xlu0 %v943
        %v946 = vpop.xlane.xlu0 %945
        %v947 = vsub.f32 %v943, %v946
        %v948 = vmul.f32 %v947, 1.442695
        %v949 = vpow.pop %v948
        %v950 = vld [vmem:[#allocation2] sm:$0xff]
        %v951 = vld [vmem:[#allocation2 + $0x8] sm:$0xff]
        %v952 = vld [vmem:[#allocation2 + $0x10] sm:$0xff]
        %v953 = vld [vmem:[#allocation2 + $0x18] sm:$0xff]
        %v954 = vld [vmem:[#allocation2 + $0x20] sm:$0xff]
        %v955 = vld [vmem:[#allocation2 + $0x28] sm:$0xff]
        %v956 = vld [vmem:[#allocation2 + $0x30] sm:$0xff]
        %v957 = vld [vmem:[#allocation2 + $0x38] sm:$0xff]
        %v958 = vld [vmem:[#allocation2 + $0x40] sm:$0xff]
        %v959 = vld [vmem:[#allocation2 + $0x48] sm:$0xff]
        %v960 = vld [vmem:[#allocation2 + $0x50] sm:$0xff]
        %v961 = vld [vmem:[#allocation2 + $0x58] sm:$0xff]
        %v962 = vld [vmem:[#allocation2 + $0x60] sm:$0xff]
        %v963 = vld [vmem:[#allocation2 + $0x68] sm:$0xff]
        %v964 = vld [vmem:[#allocation2 + $0x70] sm:$0xff]
        %v965 = vld [vmem:[#allocation2 + $0x78] sm:$0xff]
        %966 = vmatpush.msra.mxu0 %v965
        %967 = vmatpush.msra.mxu0 %v964
        %968 = vmatpush.msra.mxu0 %v963
        %969 = vmatpush.msra.mxu0 %v962
        %970 = vmatpush.msra.mxu0 %v961
        %971 = vmatpush.msra.mxu0 %v960
        %972 = vmatpush.msra.mxu0 %v959
        %973 = vmatpush.msra.mxu0 %v958
        %974 = vmatpush.msra.mxu0 %v957
        %975 = vmatpush.msra.mxu0 %v956
        %976 = vmatpush.msra.mxu0 %v955
        %977 = vmatpush.msra.mxu0 %v954
        %978 = vmatpush.msra.mxu0 %v953
        %979 = vmatpush.msra.mxu0 %v952
        %980 = vmatpush.msra.mxu0 %v951
        %981 = vmatpush.msra.mxu0 %v950
        %982 = vmatmul.f32.gmra.mxu0 %v949
        %v983 = vpop.f32.mrf.mxu0
        %v984 = vadd.f32 0.0, %v983
        %985 = vdwg.mxu0
        %v986 = vld [vmem:[#allocation15] sm:$0xff]
        %v987 = vld [vmem:[#allocation15 + $0x8] sm:$0xff]
        %v988 = vld [vmem:[#allocation15 + $0x10] sm:$0xff]
        %v989 = vld [vmem:[#allocation15 + $0x18] sm:$0xff]
        %v990 = vld [vmem:[#allocation15 + $0x20] sm:$0xff]
        %v991 = vld [vmem:[#allocation15 + $0x28] sm:$0xff]
        %v992 = vld [vmem:[#allocation15 + $0x30] sm:$0xff]
        %v993 = vld [vmem:[#allocation15 + $0x38] sm:$0xff]
        %v994 = vld [vmem:[#allocation15 + $0x40] sm:$0xff]
        %v995 = vld [vmem:[#allocation15 + $0x48] sm:$0xff]
        %v996 = vld [vmem:[#allocation15 + $0x50] sm:$0xff]
        %v997 = vld [vmem:[#allocation15 + $0x58] sm:$0xff]
        %v998 = vld [vmem:[#allocation15 + $0x60] sm:$0xff]
        %v999 = vld [vmem:[#allocation15 + $0x68] sm:$0xff]
        %v1000 = vld [vmem:[#allocation15 + $0x70] sm:$0xff]
        %v1001 = vld [vmem:[#allocation15 + $0x78] sm:$0xff]
        %1002 = vmatpush.msra.mxu0 %v1001
        %1003 = vmatpush.msra.mxu0 %v1000
        %1004 = vmatpush.msra.mxu0 %v999
        %1005 = vmatpush.msra.mxu0 %v998
        %1006 = vmatpush.msra.mxu0 %v997
        %1007 = vmatpush.msra.mxu0 %v996
        %1008 = vmatpush.msra.mxu0 %v995
        %1009 = vmatpush.msra.mxu0 %v994
        %1010 = vmatpush.msra.mxu0 %v993
        %1011 = vmatpush.msra.mxu0 %v992
        %1012 = vmatpush.msra.mxu0 %v991
        %1013 = vmatpush.msra.mxu0 %v990
        %1014 = vmatpush.msra.mxu0 %v989
        %1015 = vmatpush.msra.mxu0 %v988
        %1016 = vmatpush.msra.mxu0 %v987
        %1017 = vmatpush.msra.mxu0 %v986
        %1018 = vmatmul.f32.gmra.mxu0 %v949
        %v1019 = vpop.f32.mrf.mxu0
        %v1020 = vadd.f32 0.0, %v1019
        %1021 = vdwg.mxu0
        %v1022 = vrcp.pop %v1020
        %v1023 = vmul.f32 %v984, %v1022
        %v1024 = vld [vmem:[#allocation14] sm:$0xff]
        %v1025 = vld [vmem:[#allocation14 + $0x8] sm:$0xff]
        %v1026 = vld [vmem:[#allocation14 + $0x10] sm:$0xff]
        %v1027 = vld [vmem:[#allocation14 + $0x18] sm:$0xff]
        %v1028 = vld [vmem:[#allocation14 + $0x20] sm:$0xff]
        %v1029 = vld [vmem:[#allocation14 + $0x28] sm:$0xff]
        %v1030 = vld [vmem:[#allocation14 + $0x30] sm:$0xff]
        %v1031 = vld [vmem:[#allocation14 + $0x38] sm:$0xff]
        %v1032 = vld [vmem:[#allocation14 + $0x40] sm:$0xff]
        %v1033 = vld [vmem:[#allocation14 + $0x48] sm:$0xff]
        %v1034 = vld [vmem:[#allocation14 + $0x50] sm:$0xff]
        %v1035 = vld [vmem:[#allocation14 + $0x58] sm:$0xff]
        %v1036 = vld [vmem:[#allocation14 + $0x60] sm:$0xff]
        %v1037 = vld [vmem:[#allocation14 + $0x68] sm:$0xff]
        %v1038 = vld [vmem:[#allocation14 + $0x70] sm:$0xff]
        %v1039 = vld [vmem:[#allocation14 + $0x78] sm:$0xff]
        %v1040 = vld [vmem:[%s10] sm:$0x1]
        %v1042 = vperm.slane %v1040, 0
        %1044 = vmatpush.msra.mxu0 %v1039
        %1045 = vmatpush.msra.mxu0 %v1038
        %1046 = vmatpush.msra.mxu0 %v1037
        %1047 = vmatpush.msra.mxu0 %v1036
        %1048 = vmatpush.msra.mxu0 %v1035
        %1049 = vmatpush.msra.mxu0 %v1034
        %1050 = vmatpush.msra.mxu0 %v1033
        %1051 = vmatpush.msra.mxu0 %v1032
        %1052 = vmatpush.msra.mxu0 %v1031
        %1053 = vmatpush.msra.mxu0 %v1030
        %1054 = vmatpush.msra.mxu0 %v1029
        %1055 = vmatpush.msra.mxu0 %v1028
        %1056 = vmatpush.msra.mxu0 %v1027
        %1057 = vmatpush.msra.mxu0 %v1026
        %1058 = vmatpush.msra.mxu0 %v1025
        %1059 = vmatpush.msra.mxu0 %v1024
        %1060 = vmatmul.f32.gmra.mxu0 %v1023
        %v1061 = vpop.f32.mrf.mxu0
        %v1062 = vadd.f32 %v1042, %v1061
        %1063 = vdwg.mxu0
        %1064 = vst [vmem:[%s606] sm:$0xff] %v1062
        %s1065 = sand.u32 %s326, 1
        %s1066 = scalar_lea.sflag [#allocation5], %s1065
        %s1067 = sand.u32 %s326, 1
        %s1068 = smul.addr %s1067, 8
        %s1069 = scalar_lea.vmem [#allocation17], %s1068
        // Predicated region
        $region105: #{tpu_custom_call.1} parent=67 // pred_check
          %p1070 = pneg %p336
        $region106: #{tpu_custom_call.1} parent=67 // pred_check_branch
          %1072 = sbr.rel (%p1070) target = $region108
        $region107: #{tpu_custom_call.1} parent=67 // pred_region
          %1074 = vsyncadd %s1066, 0
          %s1075 = smul.addr %s40, 2
          %s1076 = sadd.s32 %s39, %s1075
          %s1077 = smul.addr %s1076, 8
          %s1078 = scalar_lea.hbm %s12, %s1077
          %s1080 = sshll.u32 %s1069, 4
          %s1081 = int_to_ptr.vmem [resolvable:$true] %s1080
          %s1082 = sshll.u32 %s1078, 4
          %s1083 = int_to_ptr.hbm [resolvable:$true] %s1082
          %1085 = dma.vmem_to_hbm [thread:$0]  %s1081, 128, %s1083, %s1066
        $region108: #{tpu_custom_call.1} parent=67 // pred_fallthru
          _
      $region68: #{tpu_custom_call.1} parent=5 // pred_fallthru
        _
      %p1086 = scmp.le.s32.totalorder 2, %s30
      // Predicated region
      $region109: #{tpu_custom_call.1} parent=5 // pred_check
        %p1087 = pneg %p1086
      $region110: #{tpu_custom_call.1} parent=5 // pred_check_branch
        %1089 = sbr.rel (%p1087) target = $region112
      $region111: #{tpu_custom_call.1} parent=5 // pred_region
        %s1090 = ssub.s32 %s30, 2
        // Predicated region
        $region113: #{tpu_custom_call.1} parent=111 // pred_check
          %p1091 = pneg %p342
        $region114: #{tpu_custom_call.1} parent=111 // pred_check_branch
          %1093 = sbr.rel (%p1091) target = $region116
        $region115: #{tpu_custom_call.1} parent=111 // pred_region
          %s1094 = sand.u32 %s327, 1
          %s1095 = scalar_lea.sflag [#allocation5], %s1094
          %s1096 = sand.u32 %s327, 1
          %s1097 = smul.addr %s1096, 8
          %s1098 = scalar_lea.vmem [#allocation17], %s1097
          %1100 = dma.done %s1095, 128
        $region116: #{tpu_custom_call.1} parent=111 // pred_fallthru
          _
      $region112: #{tpu_custom_call.1} parent=5 // pred_fallthru
        _
    $region6: #{tpu_custom_call.1} parent=1 // loop_footer
      %s34 = sadd.s32 1, %s30
    $region7: #{tpu_custom_call.1} parent=1 // loop_footer_branch
      %29 = sbr.rel target = $region3
    $region8: #{tpu_custom_call.1} parent=1 // loop_exit
      _
    %1101 = vsyncpa [#allocation4], 1
    %s1102 = scalar_lea.sflag [#allocation4], 1
    %1103 = vsyncpa %s1102, 1
    %1104 = vsyncpa [#allocation7], 1
    %s1105 = scalar_lea.sflag [#allocation7], 1
    %1106 = vsyncpa %s1105, 1
    %1107 = vsyncpa [#allocation10], 1
    %1108 = vsyncpa [#allocation13], 1
    %1109 = vsyncpa [#allocation16], 1
    %1110 = vsyncpa [#allocation5], 1
    %s1111 = scalar_lea.sflag [#allocation5], 1
    %1112 = vsyncpa %s1111, 1

// kernel: tpu_custom_call.1
$region0: #{tpu_custom_call.1}
  #allocation0 [shape = 'u32[]', space=smem, size = 0x4, offset = 0x4, fixed_abs, tag = 'smem constant byte address 0x4 - core index']
  #allocation1 [shape = 'u32[72,128]{1,0:T(1,128)}', space=vmem, size = 0x9000, scoped, tag = 'internal scratch']
  #allocation2 [shape = 'f32[128,128]{1,0:T(8,128)}', space=vmem, size = 0x10000, scoped, tag = 'scratch operand']
  %s0 = inlined_call_operand.hbm [shape: f32[8,256], index: 0, kind: input, shape index: {}]
  %s1 = inlined_call_operand.hbm [shape: f32[8,256], index: 1, kind: input, shape index: {}]
  %s2 = inlined_call_operand.hbm [shape: f32[8,256], index: 2, kind: input, shape index: {}]
  %s3 = inlined_call_operand.hbm [shape: f32[128,128], index: 3, kind: input, shape index: {}]
  %s4 = inlined_call_operand.vmem [shape: f32[1,128], index: 4, kind: input, shape index: {}]
  %s5 = inlined_call_operand.hbm [shape: f32[128,128], index: 5, kind: input, shape index: {}]
  %s6 = inlined_call_operand.vmem [shape: f32[1,128], index: 6, kind: input, shape index: {}]
  %s7 = inlined_call_operand.hbm [shape: f32[128,128], index: 7, kind: input, shape index: {}]
  %s8 = inlined_call_operand.vmem [shape: f32[1,128], index: 8, kind: input, shape index: {}]
  %s9 = inlined_call_operand.hbm [shape: f32[128,128], index: 9, kind: input, shape index: {}]
  %s10 = inlined_call_operand.vmem [shape: f32[1,128], index: 10, kind: input, shape index: {}]
  %s11 = inlined_call_operand.hbm [shape: f32[128,128], index: 11, kind: input, shape index: {}]
  %s12 = inlined_call_operand.hbm [shape: f32[8,256], index: 12, kind: output, shape index: {}]
  %s13 = sld [smem:[#allocation0]]
  $region117: #{tpu_custom_call.1} parent=0
    _
  %s15 = ssub.s32 1, %s13
  %s16 = scalar_select 0, %s15, %s13
  $region1: #{tpu_custom_call.1} parent=0
    #allocation3 [shape = 'u8[8192]{0}', space=vmem, size = 0x2000, scoped, tag = 'input window, operand 0']
    #allocation4 [shape = 's32[2]{0}', space=sflag, size = 0x8, scoped, tag = 'scoped memory for tpu_custom_call.1']
    #allocation5 [shape = 's32[2]{0}', space=sflag, size = 0x8, scoped, tag = 'scoped memory for tpu_custom_call.1']
    #allocation6 [shape = 'u8[8192]{0}', space=vmem, size = 0x2000, scoped, tag = 'input window, operand 1']
    #allocation7 [shape = 's32[2]{0}', space=sflag, size = 0x8, scoped, tag = 'scoped memory for tpu_custom_call.1']
    #allocation8 [shape = 'u8[8192]{0}', space=vmem, size = 0x2000, scoped, tag = 'input window, operand 2']
    #allocation9 [shape = 'u8[65536]{0}', space=vmem, size = 0x10000, scoped, tag = 'input window, operand 3, single buffered']
    #allocation10 [shape = 's32[1]{0}', space=sflag, size = 0x4, scoped, tag = 'scoped memory for tpu_custom_call.1']
    #allocation11 [shape = 'u8[65536]{0}', space=vmem, size = 0x10000, scoped, tag = 'input window, operand 5, single buffered']
    #allocation12 [shape = 'u8[65536]{0}', space=vmem, size = 0x10000, scoped, tag = 'input window, operand 7, single buffered']
    #allocation13 [shape = 's32[1]{0}', space=sflag, size = 0x4, scoped, tag = 'scoped memory for tpu_custom_call.1']
    #allocation14 [shape = 'u8[65536]{0}', space=vmem, size = 0x10000, scoped, tag = 'input window, operand 9, single buffered']
    #allocation15 [shape = 'u8[65536]{0}', space=vmem, size = 0x10000, scoped, tag = 'input window, operand 11, single buffered']
    #allocation16 [shape = 's32[1]{0}', space=sflag, size = 0x4, scoped, tag = 'scoped memory for tpu_custom_call.1']
    #allocation17 [shape = 'u8[8192]{0}', space=vmem, size = 0x2000, scoped, tag = 'output window, operand 0']
    %17 = vsyncpa [#allocation4], 0
    %s18 = scalar_lea.sflag [#allocation4], 1
    %19 = vsyncpa %s18, 0
    %20 = vsyncpa [#allocation7], 0
    %s21 = scalar_lea.sflag [#allocation7], 1
    %22 = vsyncpa %s21, 0
    %23 = vsyncpa [#allocation10], 0
    %24 = vsyncpa [#allocation13], 0
    %25 = vsyncpa [#allocation16], 0
    %26 = vsyncpa [#allocation5], 0
    %s27 = scalar_lea.sflag [#allocation5], 1
    %28 = vsyncpa %s27, 0
    loop: start=0, step=1, limit=4
    $region2: #{tpu_custom_call.1} parent=1 // loop_pre_header
      _
    $region3: #{tpu_custom_call.1} parent=1 // loop_header
      %s30 = sphi 0, %s34
      %p31 = scmp.ge.s32.totalorder %s30, 4
      %s37 = sphi 0, %s49
      %s38 = sphi 0, %s45
      %s39 = sphi 0, %s37
      %s40 = sphi 0, %s38
      %s41 = sphi 0, %s39
      %s42 = sphi 0, %s40
      %s54 = sphi 0, %s56
      %s57 = sphi 0, %s54
      %s58 = sphi 0, %s57
      %s74 = sphi 0, %s58
      %s80 = sphi 0, %s82
      %s83 = sphi 0, %s80
      %s84 = sphi 0, %s83
      %s100 = sphi 0, %s84
      %s106 = sphi 0, %s108
      %s109 = sphi 0, %s106
      %s110 = sphi 0, %s109
      %s126 = sphi 0, %s110
      %s130 = sphi 0, %s130
      %s132 = sphi 0, %s130
      %s133 = sphi 0, %s132
      %s147 = sphi 0, %s133
      %s151 = sphi 0, %s151
      %s153 = sphi 0, %s151
      %s154 = sphi 0, %s153
      %s168 = sphi 0, %s154
      %s172 = sphi 0, %s172
      %s174 = sphi 0, %s172
      %s175 = sphi 0, %s174
      %s189 = sphi 0, %s175
      %s193 = sphi 0, %s193
      %s195 = sphi 0, %s193
      %s196 = sphi 0, %s195
      %s210 = sphi 0, %s196
      %s214 = sphi 0, %s214
      %s216 = sphi 0, %s214
      %s217 = sphi 0, %s216
      %s231 = sphi 0, %s217
      %s235 = sphi 0, %s235
      %s237 = sphi 0, %s235
      %s238 = sphi 0, %s237
      %s252 = sphi 0, %s238
      %s256 = sphi 0, %s256
      %s258 = sphi 0, %s256
      %s259 = sphi 0, %s258
      %s273 = sphi 0, %s259
      %s277 = sphi 0, %s277
      %s279 = sphi 0, %s277
      %s280 = sphi 0, %s279
      %s294 = sphi 0, %s280
      %s298 = sphi 0, %s298
      %s300 = sphi 0, %s298
      %s301 = sphi 0, %s300
      %s315 = sphi 0, %s301
      %s323 = sphi 0, %s325
      %s326 = sphi 0, %s323
      %s327 = sphi 0, %s326
      %s343 = sphi 0, %s327
    $region4: #{tpu_custom_call.1} parent=1 // loop_header_branch
      %33 = sbr.rel (%p31) target = $region8
    $region5: #{tpu_custom_call.1} parent=1 // loop_body
      %s35 = ssub.s32 %s30, 1
      %s36 = ssub.s32 %s30, 2
      %s43 = sadd.s32 1, %s38
      %p44 = scmp.ge.s32.totalorder %s43, 1
      %s45 = scalar_select %p44, 0, %s43
      %s46 = sadd.s32 1, %s37
      %s47 = scalar_select %p44, %s46, %s37
      %p48 = scmp.ge.s32.totalorder %s47, 2
      %s49 = scalar_select %p48, 0, %s47
      %s50 = ssub.s32 %s38, %s45
      %s51 = ssub.s32 %s37, %s49
      %s52 = sor.u32 %s50, %s51
      %p53 = scmp.eq.s32.totalorder %s52, 0
      %s55 = sadd.s32 %s54, 1
      %s56 = scalar_select %p53, %s54, %s55
      %p59 = pneg %p53
      %p60 = scmp.eq.s32.totalorder %s30, 1
      %p61 = por %p59, %p60
      %p62 = scmp.ne.s32.totalorder %s54, %s57
      %p63 = scmp.eq.s32.totalorder %s30, 0
      %p64 = por %p62, %p63
      %p65 = scmp.ne.s32.totalorder %s54, %s57
      %p66 = scmp.eq.s32.totalorder %s35, 1
      %p67 = por %p65, %p66
      %p68 = scmp.ne.s32.totalorder %s57, %s58
      %p69 = scmp.eq.s32.totalorder %s35, 0
      %p70 = por %p68, %p69
      %p71 = scmp.ne.s32.totalorder %s57, %s58
      %p72 = scmp.eq.s32.totalorder %s36, 1
      %p73 = por %p71, %p72
      %p75 = scmp.ne.s32.totalorder %s58, %s74
      %p76 = scmp.eq.s32.totalorder %s36, 0
      %p77 = por %p75, %p76
      %s78 = ssub.s32 %s37, %s49
      %p79 = scmp.eq.s32.totalorder %s78, 0
      %s81 = sadd.s32 %s80, 1
      %s82 = scalar_select %p79, %s80, %s81
      %p85 = pneg %p79
      %p86 = scmp.eq.s32.totalorder %s30, 1
      %p87 = por %p85, %p86
      %p88 = scmp.ne.s32.totalorder %s80, %s83
      %p89 = scmp.eq.s32.totalorder %s30, 0
      %p90 = por %p88, %p89
      %p91 = scmp.ne.s32.totalorder %s80, %s83
      %p92 = scmp.eq.s32.totalorder %s35, 1
      %p93 = por %p91, %p92
      %p94 = scmp.ne.s32.totalorder %s83, %s84
      %p95 = scmp.eq.s32.totalorder %s35, 0
      %p96 = por %p94, %p95
      %p97 = scmp.ne.s32.totalorder %s83, %s84
      %p98 = scmp.eq.s32.totalorder %s36, 1
      %p99 = por %p97, %p98
      %p101 = scmp.ne.s32.totalorder %s84, %s100
      %p102 = scmp.eq.s32.totalorder %s36, 0
      %p103 = por %p101, %p102
      %s104 = ssub.s32 %s37, %s49
      %p105 = scmp.eq.s32.totalorder %s104, 0
      %s107 = sadd.s32 %s106, 1
      %s108 = scalar_select %p105, %s106, %s107
      %p111 = pneg %p105
      %p112 = scmp.eq.s32.totalorder %s30, 1
      %p113 = por %p111, %p112
      %p114 = scmp.ne.s32.totalorder %s106, %s109
      %p115 = scmp.eq.s32.totalorder %s30, 0
      %p116 = por %p114, %p115
      %p117 = scmp.ne.s32.totalorder %s106, %s109
      %p118 = scmp.eq.s32.totalorder %s35, 1
      %p119 = por %p117, %p118
      %p120 = scmp.ne.s32.totalorder %s109, %s110
      %p121 = scmp.eq.s32.totalorder %s35, 0
      %p122 = por %p120, %p121
      %p123 = scmp.ne.s32.totalorder %s109, %s110
      %p124 = scmp.eq.s32.totalorder %s36, 1
      %p125 = por %p123, %p124
      %p127 = scmp.ne.s32.totalorder %s110, %s126
      %p128 = scmp.eq.s32.totalorder %s36, 0
      %p129 = por %p127, %p128
      %s131 = sadd.s32 %s130, 1
      %p134 = scmp.eq.s32.totalorder %s30, 1
      %p135 = scmp.ne.s32.totalorder %s130, %s132
      %p136 = scmp.eq.s32.totalorder %s30, 0
      %p137 = por %p135, %p136
      %p138 = scmp.ne.s32.totalorder %s130, %s132
      %p139 = scmp.eq.s32.totalorder %s35, 1
      %p140 = por %p138, %p139
      %p141 = scmp.ne.s32.totalorder %s132, %s133
      %p142 = scmp.eq.s32.totalorder %s35, 0
      %p143 = por %p141, %p142
      %p144 = scmp.ne.s32.totalorder %s132, %s133
      %p145 = scmp.eq.s32.totalorder %s36, 1
      %p146 = por %p144, %p145
      %p148 = scmp.ne.s32.totalorder %s133, %s147
      %p149 = scmp.eq.s32.totalorder %s36, 0
      %p150 = por %p148, %p149
      %s152 = sadd.s32 %s151, 1
      %p155 = scmp.eq.s32.totalorder %s30, 1
      %p156 = scmp.ne.s32.totalorder %s151, %s153
      %p157 = scmp.eq.s32.totalorder %s30, 0
      %p158 = por %p156, %p157
      %p159 = scmp.ne.s32.totalorder %s151, %s153
      %p160 = scmp.eq.s32.totalorder %s35, 1
      %p161 = por %p159, %p160
      %p162 = scmp.ne.s32.totalorder %s153, %s154
      %p163 = scmp.eq.s32.totalorder %s35, 0
      %p164 = por %p162, %p163
      %p165 = scmp.ne.s32.totalorder %s153, %s154
      %p166 = scmp.eq.s32.totalorder %s36, 1
      %p167 = por %p165, %p166
      %p169 = scmp.ne.s32.totalorder %s154, %s168
      %p170 = scmp.eq.s32.totalorder %s36, 0
      %p171 = por %p169, %p170
      %s173 = sadd.s32 %s172, 1
      %p176 = scmp.eq.s32.totalorder %s30, 1
      %p177 = scmp.ne.s32.totalorder %s172, %s174
      %p178 = scmp.eq.s32.totalorder %s30, 0
      %p179 = por %p177, %p178
      %p180 = scmp.ne.s32.totalorder %s172, %s174
      %p181 = scmp.eq.s32.totalorder %s35, 1
      %p182 = por %p180, %p181
      %p183 = scmp.ne.s32.totalorder %s174, %s175
      %p184 = scmp.eq.s32.totalorder %s35, 0
      %p185 = por %p183, %p184
      %p186 = scmp.ne.s32.totalorder %s174, %s175
      %p187 = scmp.eq.s32.totalorder %s36, 1
      %p188 = por %p186, %p187
      %p190 = scmp.ne.s32.totalorder %s175, %s189
      %p191 = scmp.eq.s32.totalorder %s36, 0
      %p192 = por %p190, %p191
      %s194 = sadd.s32 %s193, 1
      %p197 = scmp.eq.s32.totalorder %s30, 1
      %p198 = scmp.ne.s32.totalorder %s193, %s195
      %p199 = scmp.eq.s32.totalorder %s30, 0
      %p200 = por %p198, %p199
      %p201 = scmp.ne.s32.totalorder %s193, %s195
      %p202 = scmp.eq.s32.totalorder %s35, 1
      %p203 = por %p201, %p202
      %p204 = scmp.ne.s32.totalorder %s195, %s196
      %p205 = scmp.eq.s32.totalorder %s35, 0
      %p206 = por %p204, %p205
      %p207 = scmp.ne.s32.totalorder %s195, %s196
      %p208 = scmp.eq.s32.totalorder %s36, 1
      %p209 = por %p207, %p208
      %p211 = scmp.ne.s32.totalorder %s196, %s210
      %p212 = scmp.eq.s32.totalorder %s36, 0
      %p213 = por %p211, %p212
      %s215 = sadd.s32 %s214, 1
      %p218 = scmp.eq.s32.totalorder %s30, 1
      %p219 = scmp.ne.s32.totalorder %s214, %s216
      %p220 = scmp.eq.s32.totalorder %s30, 0
      %p221 = por %p219, %p220
      %p222 = scmp.ne.s32.totalorder %s214, %s216
      %p223 = scmp.eq.s32.totalorder %s35, 1
      %p224 = por %p222, %p223
      %p225 = scmp.ne.s32.totalorder %s216, %s217
      %p226 = scmp.eq.s32.totalorder %s35, 0
      %p227 = por %p225, %p226
      %p228 = scmp.ne.s32.totalorder %s216, %s217
      %p229 = scmp.eq.s32.totalorder %s36, 1
      %p230 = por %p228, %p229
      %p232 = scmp.ne.s32.totalorder %s217, %s231
      %p233 = scmp.eq.s32.totalorder %s36, 0
      %p234 = por %p232, %p233
      %s236 = sadd.s32 %s235, 1
      %p239 = scmp.eq.s32.totalorder %s30, 1
      %p240 = scmp.ne.s32.totalorder %s235, %s237
      %p241 = scmp.eq.s32.totalorder %s30, 0
      %p242 = por %p240, %p241
      %p243 = scmp.ne.s32.totalorder %s235, %s237
      %p244 = scmp.eq.s32.totalorder %s35, 1
      %p245 = por %p243, %p244
      %p246 = scmp.ne.s32.totalorder %s237, %s238
      %p247 = scmp.eq.s32.totalorder %s35, 0
      %p248 = por %p246, %p247
      %p249 = scmp.ne.s32.totalorder %s237, %s238
      %p250 = scmp.eq.s32.totalorder %s36, 1
      %p251 = por %p249, %p250
      %p253 = scmp.ne.s32.totalorder %s238, %s252
      %p254 = scmp.eq.s32.totalorder %s36, 0
      %p255 = por %p253, %p254
      %s257 = sadd.s32 %s256, 1
      %p260 = scmp.eq.s32.totalorder %s30, 1
      %p261 = scmp.ne.s32.totalorder %s256, %s258
      %p262 = scmp.eq.s32.totalorder %s30, 0
      %p263 = por %p261, %p262
      %p264 = scmp.ne.s32.totalorder %s256, %s258
      %p265 = scmp.eq.s32.totalorder %s35, 1
      %p266 = por %p264, %p265
      %p267 = scmp.ne.s32.totalorder %s258, %s259
      %p268 = scmp.eq.s32.totalorder %s35, 0
      %p269 = por %p267, %p268
      %p270 = scmp.ne.s32.totalorder %s258, %s259
      %p271 = scmp.eq.s32.totalorder %s36, 1
      %p272 = por %p270, %p271
      %p274 = scmp.ne.s32.totalorder %s259, %s273
      %p275 = scmp.eq.s32.totalorder %s36, 0
      %p276 = por %p274, %p275
      %s278 = sadd.s32 %s277, 1
      %p281 = scmp.eq.s32.totalorder %s30, 1
      %p282 = scmp.ne.s32.totalorder %s277, %s279
      %p283 = scmp.eq.s32.totalorder %s30, 0
      %p284 = por %p282, %p283
      %p285 = scmp.ne.s32.totalorder %s277, %s279
      %p286 = scmp.eq.s32.totalorder %s35, 1
      %p287 = por %p285, %p286
      %p288 = scmp.ne.s32.totalorder %s279, %s280
      %p289 = scmp.eq.s32.totalorder %s35, 0
      %p290 = por %p288, %p289
      %p291 = scmp.ne.s32.totalorder %s279, %s280
      %p292 = scmp.eq.s32.totalorder %s36, 1
      %p293 = por %p291, %p292
      %p295 = scmp.ne.s32.totalorder %s280, %s294
      %p296 = scmp.eq.s32.totalorder %s36, 0
      %p297 = por %p295, %p296
      %s299 = sadd.s32 %s298, 1
      %p302 = scmp.eq.s32.totalorder %s30, 1
      %p303 = scmp.ne.s32.totalorder %s298, %s300
      %p304 = scmp.eq.s32.totalorder %s30, 0
      %p305 = por %p303, %p304
      %p306 = scmp.ne.s32.totalorder %s298, %s300
      %p307 = scmp.eq.s32.totalorder %s35, 1
      %p308 = por %p306, %p307
      %p309 = scmp.ne.s32.totalorder %s300, %s301
      %p310 = scmp.eq.s32.totalorder %s35, 0
      %p311 = por %p309, %p310
      %p312 = scmp.ne.s32.totalorder %s300, %s301
      %p313 = scmp.eq.s32.totalorder %s36, 1
      %p314 = por %p312, %p313
      %p316 = scmp.ne.s32.totalorder %s301, %s315
      %p317 = scmp.eq.s32.totalorder %s36, 0
      %p318 = por %p316, %p317
      %s319 = ssub.s32 %s38, %s45
      %s320 = ssub.s32 %s37, %s49
      %s321 = sor.u32 %s319, %s320
      %p322 = scmp.eq.s32.totalorder %s321, 0
      %s324 = sadd.s32 %s323, 1
      %s325 = scalar_select %p322, %s323, %s324
      %p328 = pneg %p322
      %p329 = scmp.eq.s32.totalorder %s30, 1
      %p330 = por %p328, %p329
      %p331 = scmp.ne.s32.totalorder %s323, %s326
      %p332 = scmp.eq.s32.totalorder %s30, 0
      %p333 = por %p331, %p332
      %p334 = scmp.ne.s32.totalorder %s323, %s326
      %p335 = scmp.eq.s32.totalorder %s35, 1
      %p336 = por %p334, %p335
      %p337 = scmp.ne.s32.totalorder %s326, %s327
      %p338 = scmp.eq.s32.totalorder %s35, 0
      %p339 = por %p337, %p338
      %p340 = scmp.ne.s32.totalorder %s326, %s327
      %p341 = scmp.eq.s32.totalorder %s36, 1
      %p342 = por %p340, %p341
      %p344 = scmp.ne.s32.totalorder %s327, %s343
      %p345 = scmp.eq.s32.totalorder %s36, 0
      %p346 = por %p344, %p345
      %p347 = scmp.le.s32.totalorder 1, %s30
      %p348 = scmp.lt.s32.totalorder %s30, 3
      %p349 = pnand %p347, %p348
      %p350 = pneg %p349
      // Predicated region
      $region9: #{tpu_custom_call.1} parent=5 // pred_check
        _
      $region10: #{tpu_custom_call.1} parent=5 // pred_check_branch
        %352 = sbr.rel (%p349) target = $region12
      $region11: #{tpu_custom_call.1} parent=5 // pred_region
        %s353 = ssub.s32 %s30, 1
        // Predicated region
        $region13: #{tpu_custom_call.1} parent=11 // pred_check
          %p354 = pneg %p143
        $region14: #{tpu_custom_call.1} parent=11 // pred_check_branch
          %356 = sbr.rel (%p354) target = $region16
        $region15: #{tpu_custom_call.1} parent=11 // pred_region
          %358 = vsyncadd [#allocation10], 0
          %s359 = sshll.u32 %s3, 4
          %s360 = int_to_ptr.hbm [resolvable:$true] %s359
          %s361 = sshll.u32 [#allocation9], 4
          %s362 = int_to_ptr.vmem [resolvable:$true] %s361
          %367 = dma.hbm_to_vmem [thread:$0]  %s360, 2048, %s362, [#allocation10], 128, 128, 8
        $region16: #{tpu_custom_call.1} parent=11 // pred_fallthru
          _
        // Predicated region
        $region17: #{tpu_custom_call.1} parent=11 // pred_check
          %p368 = pneg %p164
        $region18: #{tpu_custom_call.1} parent=11 // pred_check_branch
          %370 = sbr.rel (%p368) target = $region20
        $region19: #{tpu_custom_call.1} parent=11 // pred_region
          _
        $region20: #{tpu_custom_call.1} parent=11 // pred_fallthru
          _
        // Predicated region
        $region21: #{tpu_custom_call.1} parent=11 // pred_check
          %p371 = pneg %p185
        $region22: #{tpu_custom_call.1} parent=11 // pred_check_branch
          %373 = sbr.rel (%p371) target = $region24
        $region23: #{tpu_custom_call.1} parent=11 // pred_region
          %375 = vsyncadd [#allocation10], 0
          %s376 = sshll.u32 %s5, 4
          %s377 = int_to_ptr.hbm [resolvable:$true] %s376
          %s378 = sshll.u32 [#allocation11], 4
          %s379 = int_to_ptr.vmem [resolvable:$true] %s378
          %384 = dma.hbm_to_vmem [thread:$0]  %s377, 2048, %s379, [#allocation10], 128, 128, 8
        $region24: #{tpu_custom_call.1} parent=11 // pred_fallthru
          _
        // Predicated region
        $region25: #{tpu_custom_call.1} parent=11 // pred_check
          %p385 = pneg %p206
        $region26: #{tpu_custom_call.1} parent=11 // pred_check_branch
          %387 = sbr.rel (%p385) target = $region28
        $region27: #{tpu_custom_call.1} parent=11 // pred_region
          _
        $region28: #{tpu_custom_call.1} parent=11 // pred_fallthru
          _
        // Predicated region
        $region29: #{tpu_custom_call.1} parent=11 // pred_check
          %p388 = pneg %p227
        $region30: #{tpu_custom_call.1} parent=11 // pred_check_branch
          %390 = sbr.rel (%p388) target = $region32
        $region31: #{tpu_custom_call.1} parent=11 // pred_region
          %392 = vsyncadd [#allocation13], 0
          %s393 = sshll.u32 %s7, 4
          %s394 = int_to_ptr.hbm [resolvable:$true] %s393
          %s395 = sshll.u32 [#allocation12], 4
          %s396 = int_to_ptr.vmem [resolvable:$true] %s395
          %401 = dma.hbm_to_vmem [thread:$0]  %s394, 2048, %s396, [#allocation13], 128, 128, 8
        $region32: #{tpu_custom_call.1} parent=11 // pred_fallthru
          _
        // Predicated region
        $region33: #{tpu_custom_call.1} parent=11 // pred_check
          %p402 = pneg %p248
        $region34: #{tpu_custom_call.1} parent=11 // pred_check_branch
          %404 = sbr.rel (%p402) target = $region36
        $region35: #{tpu_custom_call.1} parent=11 // pred_region
          _
        $region36: #{tpu_custom_call.1} parent=11 // pred_fallthru
          _
        // Predicated region
        $region37: #{tpu_custom_call.1} parent=11 // pred_check
          %p405 = pneg %p269
        $region38: #{tpu_custom_call.1} parent=11 // pred_check_branch
          %407 = sbr.rel (%p405) target = $region40
        $region39: #{tpu_custom_call.1} parent=11 // pred_region
          %409 = vsyncadd [#allocation13], 0
          %s410 = sshll.u32 %s9, 4
          %s411 = int_to_ptr.hbm [resolvable:$true] %s410
          %s412 = sshll.u32 [#allocation14], 4
          %s413 = int_to_ptr.vmem [resolvable:$true] %s412
          %418 = dma.hbm_to_vmem [thread:$0]  %s411, 2048, %s413, [#allocation13], 128, 128, 8
        $region40: #{tpu_custom_call.1} parent=11 // pred_fallthru
          _
        // Predicated region
        $region41: #{tpu_custom_call.1} parent=11 // pred_check
          %p419 = pneg %p290
        $region42: #{tpu_custom_call.1} parent=11 // pred_check_branch
          %421 = sbr.rel (%p419) target = $region44
        $region43: #{tpu_custom_call.1} parent=11 // pred_region
          _
        $region44: #{tpu_custom_call.1} parent=11 // pred_fallthru
          _
        // Predicated region
        $region45: #{tpu_custom_call.1} parent=11 // pred_check
          %p422 = pneg %p311
        $region46: #{tpu_custom_call.1} parent=11 // pred_check_branch
          %424 = sbr.rel (%p422) target = $region48
        $region47: #{tpu_custom_call.1} parent=11 // pred_region
          %426 = vsyncadd [#allocation16], 0
          %s427 = sshll.u32 %s11, 4
          %s428 = int_to_ptr.hbm [resolvable:$true] %s427
          %s429 = sshll.u32 [#allocation15], 4
          %s430 = int_to_ptr.vmem [resolvable:$true] %s429
          %435 = dma.hbm_to_vmem [thread:$0]  %s428, 2048, %s430, [#allocation16], 128, 128, 8
        $region48: #{tpu_custom_call.1} parent=11 // pred_fallthru
          _
      $region12: #{tpu_custom_call.1} parent=5 // pred_fallthru
        _
      %p436 = scmp.lt.s32.totalorder %s30, 2
      // Predicated region
      $region49: #{tpu_custom_call.1} parent=5 // pred_check
        %p437 = pneg %p436
      $region50: #{tpu_custom_call.1} parent=5 // pred_check_branch
        %439 = sbr.rel (%p437) target = $region52
      $region51: #{tpu_custom_call.1} parent=5 // pred_region
        // Predicated region
        $region53: #{tpu_custom_call.1} parent=51 // pred_check
          %p440 = pneg %p64
        $region54: #{tpu_custom_call.1} parent=51 // pred_check_branch
          %442 = sbr.rel (%p440) target = $region56
        $region55: #{tpu_custom_call.1} parent=51 // pred_region
          %s443 = sand.u32 %s54, 1
          %s444 = scalar_lea.sflag [#allocation4], %s443
          %s445 = sand.u32 %s54, 1
          %s446 = smul.addr %s445, 8
          %s447 = scalar_lea.vmem [#allocation3], %s446
          %449 = vsyncadd %s444, 0
          %s450 = smul.addr %s38, 2
          %s451 = sadd.s32 %s37, %s450
          %s452 = smul.addr %s451, 8
          %s453 = scalar_lea.hbm %s0, %s452
          %s455 = sshll.u32 %s453, 4
          %s456 = int_to_ptr.hbm [resolvable:$true] %s455
          %s457 = sshll.u32 %s447, 4
          %s458 = int_to_ptr.vmem [resolvable:$true] %s457
          %460 = dma.hbm_to_vmem [thread:$0]  %s456, 128, %s458, %s444
        $region56: #{tpu_custom_call.1} parent=51 // pred_fallthru
          _
        // Predicated region
        $region57: #{tpu_custom_call.1} parent=51 // pred_check
          %p461 = pneg %p90
        $region58: #{tpu_custom_call.1} parent=51 // pred_check_branch
          %463 = sbr.rel (%p461) target = $region60
        $region59: #{tpu_custom_call.1} parent=51 // pred_region
          %s464 = sand.u32 %s30, 1
          %s465 = scalar_lea.sflag [#allocation7], %s464
          %s466 = sand.u32 %s80, 1
          %s467 = smul.addr %s466, 8
          %s468 = scalar_lea.vmem [#allocation6], %s467
          %470 = vsyncadd %s465, 0
          %s471 = smul.addr %s37, 8
          %s472 = scalar_lea.hbm %s1, %s471
          %s474 = sshll.u32 %s472, 4
          %s475 = int_to_ptr.hbm [resolvable:$true] %s474
          %s476 = sshll.u32 %s468, 4
          %s477 = int_to_ptr.vmem [resolvable:$true] %s476
          %479 = dma.hbm_to_vmem [thread:$0]  %s475, 128, %s477, %s465
        $region60: #{tpu_custom_call.1} parent=51 // pred_fallthru
          _
        // Predicated region
        $region61: #{tpu_custom_call.1} parent=51 // pred_check
          %p480 = pneg %p116
        $region62: #{tpu_custom_call.1} parent=51 // pred_check_branch
          %482 = sbr.rel (%p480) target = $region64
        $region63: #{tpu_custom_call.1} parent=51 // pred_region
          %s483 = sand.u32 %s30, 1
          %s484 = scalar_lea.sflag [#allocation7], %s483
          %s485 = sand.u32 %s106, 1
          %s486 = smul.addr %s485, 8
          %s487 = scalar_lea.vmem [#allocation8], %s486
          %489 = vsyncadd %s484, 0
          %s490 = smul.addr %s37, 8
          %s491 = scalar_lea.hbm %s2, %s490
          %s493 = sshll.u32 %s491, 4
          %s494 = int_to_ptr.hbm [resolvable:$true] %s493
          %s495 = sshll.u32 %s487, 4
          %s496 = int_to_ptr.vmem [resolvable:$true] %s495
          %498 = dma.hbm_to_vmem [thread:$0]  %s494, 128, %s496, %s484
        $region64: #{tpu_custom_call.1} parent=51 // pred_fallthru
          _
      $region52: #{tpu_custom_call.1} parent=5 // pred_fallthru
        _
      %p499 = scmp.le.s32.totalorder 1, %s30
      %p500 = scmp.lt.s32.totalorder %s30, 3
      %p501 = pnand %p499, %p500
      %p502 = pneg %p501
      // Predicated region
      $region65: #{tpu_custom_call.1} parent=5 // pred_check
        _
      $region66: #{tpu_custom_call.1} parent=5 // pred_check_branch
        %504 = sbr.rel (%p501) target = $region68
      $region67: #{tpu_custom_call.1} parent=5 // pred_region
        %s505 = ssub.s32 %s30, 1
        %s506 = sand.u32 %s57, 1
        %s507 = scalar_lea.sflag [#allocation4], %s506
        %s508 = sand.u32 %s57, 1
        %s509 = smul.addr %s508, 8
        %s510 = scalar_lea.vmem [#allocation3], %s509
        // Predicated region
        $region69: #{tpu_custom_call.1} parent=67 // pred_check
          %p511 = pneg %p70
        $region70: #{tpu_custom_call.1} parent=67 // pred_check_branch
          %513 = sbr.rel (%p511) target = $region72
        $region71: #{tpu_custom_call.1} parent=67 // pred_region
          %515 = dma.done %s507, 128
        $region72: #{tpu_custom_call.1} parent=67 // pred_fallthru
          _
        %s516 = sand.u32 %s35, 1
        %s517 = scalar_lea.sflag [#allocation7], %s516
        %s518 = sand.u32 %s83, 1
        %s519 = smul.addr %s518, 8
        %s520 = scalar_lea.vmem [#allocation6], %s519
        // Predicated region
        $region73: #{tpu_custom_call.1} parent=67 // pred_check
          %p521 = pneg %p96
        $region74: #{tpu_custom_call.1} parent=67 // pred_check_branch
          %523 = sbr.rel (%p521) target = $region76
        $region75: #{tpu_custom_call.1} parent=67 // pred_region
          %525 = dma.done %s517, 128
        $region76: #{tpu_custom_call.1} parent=67 // pred_fallthru
          _
        %s526 = sand.u32 %s35, 1
        %s527 = scalar_lea.sflag [#allocation7], %s526
        %s528 = sand.u32 %s109, 1
        %s529 = smul.addr %s528, 8
        %s530 = scalar_lea.vmem [#allocation8], %s529
        // Predicated region
        $region77: #{tpu_custom_call.1} parent=67 // pred_check
          %p531 = pneg %p122
        $region78: #{tpu_custom_call.1} parent=67 // pred_check_branch
          %533 = sbr.rel (%p531) target = $region80
        $region79: #{tpu_custom_call.1} parent=67 // pred_region
          %535 = dma.done %s527, 128
        $region80: #{tpu_custom_call.1} parent=67 // pred_fallthru
          _
        // Predicated region
        $region81: #{tpu_custom_call.1} parent=67 // pred_check
          %p536 = pneg %p143
        $region82: #{tpu_custom_call.1} parent=67 // pred_check_branch
          %538 = sbr.rel (%p536) target = $region84
        $region83: #{tpu_custom_call.1} parent=67 // pred_region
          %540 = dma.done [#allocation10], 2048
        $region84: #{tpu_custom_call.1} parent=67 // pred_fallthru
          _
        // Predicated region
        $region85: #{tpu_custom_call.1} parent=67 // pred_check
          %p541 = pneg %p185
        $region86: #{tpu_custom_call.1} parent=67 // pred_check_branch
          %543 = sbr.rel (%p541) target = $region88
        $region87: #{tpu_custom_call.1} parent=67 // pred_region
          %545 = dma.done [#allocation10], 2048
        $region88: #{tpu_custom_call.1} parent=67 // pred_fallthru
          _
        // Predicated region
        $region89: #{tpu_custom_call.1} parent=67 // pred_check
          %p546 = pneg %p227
        $region90: #{tpu_custom_call.1} parent=67 // pred_check_branch
          %548 = sbr.rel (%p546) target = $region92
        $region91: #{tpu_custom_call.1} parent=67 // pred_region
          %550 = dma.done [#allocation13], 2048
        $region92: #{tpu_custom_call.1} parent=67 // pred_fallthru
          _
        // Predicated region
        $region93: #{tpu_custom_call.1} parent=67 // pred_check
          %p551 = pneg %p269
        $region94: #{tpu_custom_call.1} parent=67 // pred_check_branch
          %553 = sbr.rel (%p551) target = $region96
        $region95: #{tpu_custom_call.1} parent=67 // pred_region
          %555 = dma.done [#allocation13], 2048
        $region96: #{tpu_custom_call.1} parent=67 // pred_fallthru
          _
        // Predicated region
        $region97: #{tpu_custom_call.1} parent=67 // pred_check
          %p556 = pneg %p311
        $region98: #{tpu_custom_call.1} parent=67 // pred_check_branch
          %558 = sbr.rel (%p556) target = $region100
        $region99: #{tpu_custom_call.1} parent=67 // pred_region
          %560 = dma.done [#allocation16], 2048
        $region100: #{tpu_custom_call.1} parent=67 // pred_fallthru
          _
        %s561 = sand.u32 %s57, 1
        %s562 = scalar_lea.sflag [#allocation4], %s561
        %s563 = sand.u32 %s57, 1
        %s564 = smul.addr %s563, 8
        %s565 = scalar_lea.vmem [#allocation3], %s564
        %p566 = pneg %p70
        %p567 = pneg %p67
        %s568 = sand.u32 %s35, 1
        %s569 = scalar_lea.sflag [#allocation7], %s568
        %s570 = sand.u32 %s83, 1
        %s571 = smul.addr %s570, 8
        %s572 = scalar_lea.vmem [#allocation6], %s571
        %p573 = pneg %p96
        %p574 = pneg %p93
        %s575 = sand.u32 %s35, 1
        %s576 = scalar_lea.sflag [#allocation7], %s575
        %s577 = sand.u32 %s109, 1
        %s578 = smul.addr %s577, 8
        %s579 = scalar_lea.vmem [#allocation8], %s578
        %p580 = pneg %p122
        %p581 = pneg %p119
        %p582 = pneg %p143
        %p583 = pneg %p140
        %p584 = pneg %p164
        %p585 = pneg %p161
        %p586 = pneg %p185
        %p587 = pneg %p182
        %p588 = pneg %p206
        %p589 = pneg %p203
        %p590 = pneg %p227
        %p591 = pneg %p224
        %p592 = pneg %p248
        %p593 = pneg %p245
        %p594 = pneg %p269
        %p595 = pneg %p266
        %p596 = pneg %p290
        %p597 = pneg %p287
        %p598 = pneg %p311
        %p599 = pneg %p308
        %p600 = pneg %p339
        %p601 = pneg %p336
        %s602 = sand.u32 %s326, 1
        %s603 = scalar_lea.sflag [#allocation5], %s602
        %s604 = sand.u32 %s326, 1
        %s605 = smul.addr %s604, 8
        %s606 = scalar_lea.vmem [#allocation17], %s605
        %p607 = scmp.eq.s32.totalorder %s40, 0
        // Predicated region
        $region101: #{tpu_custom_call.1} parent=67 // pred_check
          %p608 = pneg %p607
        $region102: #{tpu_custom_call.1} parent=67 // pred_check_branch
          %610 = sbr.rel (%p608) target = $region104
        $region103: #{tpu_custom_call.1} parent=67 // pred_region
          %v611 = vld [vmem:[%s520] sm:$0xff]
          %v612 = vld [vmem:[#allocation11] sm:$0xff]
          %v613 = vld [vmem:[#allocation11 + $0x8] sm:$0xff]
          %v614 = vld [vmem:[#allocation11 + $0x10] sm:$0xff]
          %v615 = vld [vmem:[#allocation11 + $0x18] sm:$0xff]
          %v616 = vld [vmem:[#allocation11 + $0x20] sm:$0xff]
          %v617 = vld [vmem:[#allocation11 + $0x28] sm:$0xff]
          %v618 = vld [vmem:[#allocation11 + $0x30] sm:$0xff]
          %v619 = vld [vmem:[#allocation11 + $0x38] sm:$0xff]
          %v620 = vld [vmem:[#allocation11 + $0x40] sm:$0xff]
          %v621 = vld [vmem:[#allocation11 + $0x48] sm:$0xff]
          %v622 = vld [vmem:[#allocation11 + $0x50] sm:$0xff]
          %v623 = vld [vmem:[#allocation11 + $0x58] sm:$0xff]
          %v624 = vld [vmem:[#allocation11 + $0x60] sm:$0xff]
          %v625 = vld [vmem:[#allocation11 + $0x68] sm:$0xff]
          %v626 = vld [vmem:[#allocation11 + $0x70] sm:$0xff]
          %v627 = vld [vmem:[#allocation11 + $0x78] sm:$0xff]
          %v628 = vld [vmem:[%s6] sm:$0x1]
          %v630 = vperm.slane %v628, 0
          %632 = vmatpush.msra.mxu0 %v627
          %633 = vmatpush.msra.mxu0 %v626
          %634 = vmatpush.msra.mxu0 %v625
          %635 = vmatpush.msra.mxu0 %v624
          %636 = vmatpush.msra.mxu0 %v623
          %637 = vmatpush.msra.mxu0 %v622
          %638 = vmatpush.msra.mxu0 %v621
          %639 = vmatpush.msra.mxu0 %v620
          %640 = vmatpush.msra.mxu0 %v619
          %641 = vmatpush.msra.mxu0 %v618
          %642 = vmatpush.msra.mxu0 %v617
          %643 = vmatpush.msra.mxu0 %v616
          %644 = vmatpush.msra.mxu0 %v615
          %645 = vmatpush.msra.mxu0 %v614
          %646 = vmatpush.msra.mxu0 %v613
          %647 = vmatpush.msra.mxu0 %v612
          %648 = vmatmul.f32.gmra.mxu0 %v611
          %v649 = vpop.f32.mrf.mxu0
          %v650 = vadd.f32 %v630, %v649
          %651 = vdwg.mxu0
          %v652 = vld [vmem:[%s530] sm:$0xff]
          %v653 = vld [vmem:[#allocation12] sm:$0xff]
          %v654 = vld [vmem:[#allocation12 + $0x8] sm:$0xff]
          %v655 = vld [vmem:[#allocation12 + $0x10] sm:$0xff]
          %v656 = vld [vmem:[#allocation12 + $0x18] sm:$0xff]
          %v657 = vld [vmem:[#allocation12 + $0x20] sm:$0xff]
          %v658 = vld [vmem:[#allocation12 + $0x28] sm:$0xff]
          %v659 = vld [vmem:[#allocation12 + $0x30] sm:$0xff]
          %v660 = vld [vmem:[#allocation12 + $0x38] sm:$0xff]
          %v661 = vld [vmem:[#allocation12 + $0x40] sm:$0xff]
          %v662 = vld [vmem:[#allocation12 + $0x48] sm:$0xff]
          %v663 = vld [vmem:[#allocation12 + $0x50] sm:$0xff]
          %v664 = vld [vmem:[#allocation12 + $0x58] sm:$0xff]
          %v665 = vld [vmem:[#allocation12 + $0x60] sm:$0xff]
          %v666 = vld [vmem:[#allocation12 + $0x68] sm:$0xff]
          %v667 = vld [vmem:[#allocation12 + $0x70] sm:$0xff]
          %v668 = vld [vmem:[#allocation12 + $0x78] sm:$0xff]
          %v669 = vld [vmem:[%s8] sm:$0x1]
          %v671 = vperm.slane %v669, 0
          %673 = vmatpush.msra.mxu0 %v668
          %674 = vmatpush.msra.mxu0 %v667
          %675 = vmatpush.msra.mxu0 %v666
          %676 = vmatpush.msra.mxu0 %v665
          %677 = vmatpush.msra.mxu0 %v664
          %678 = vmatpush.msra.mxu0 %v663
          %679 = vmatpush.msra.mxu0 %v662
          %680 = vmatpush.msra.mxu0 %v661
          %681 = vmatpush.msra.mxu0 %v660
          %682 = vmatpush.msra.mxu0 %v659
          %683 = vmatpush.msra.mxu0 %v658
          %684 = vmatpush.msra.mxu0 %v657
          %685 = vmatpush.msra.mxu0 %v656
          %686 = vmatpush.msra.mxu0 %v655
          %687 = vmatpush.msra.mxu0 %v654
          %688 = vmatpush.msra.mxu0 %v653
          %689 = vmatmul.f32.gmra.mxu0 %v652
          %v690 = vpop.f32.mrf.mxu0
          %v691 = vadd.f32 %v671, %v690
          %692 = vdwg.mxu0
          %v693 = vrot.slane %v650, 4
          %v694 = vmax.f32 %v650, %v693
          %v695 = vrot.slane %v694, 2
          %v696 = vmax.f32 %v694, %v695
          %v697 = vrot.slane %v696, 1
          %v698 = vmax.f32 %v696, %v697
          %v699 = vsub.f32 %v650, %v698
          %v700 = vmul.f32 %v699, 1.442695
          %v701 = vpow.pop %v700
          %v702 = vrot.slane %v701, 4
          %v703 = vadd.f32 %v701, %v702
          %v704 = vrot.slane %v703, 2
          %v705 = vadd.f32 %v703, %v704
          %v706 = vrot.slane %v705, 1
          %v707 = vadd.f32 %v705, %v706
          %v708 = vrcp.pop %v707
          %v709 = vmul.f32 %v701, %v708
          %710 = vxpose.xlu0.b32.start [1/16] %v709, 128
          %711 = vxpose.xlu0.b32.cont [2/16] 0.0, 128
          %712 = vxpose.xlu0.b32.cont [3/16] 0.0, 128
          %713 = vxpose.xlu0.b32.cont [4/16] 0.0, 128
          %714 = vxpose.xlu0.b32.cont [5/16] 0.0, 128
          %715 = vxpose.xlu0.b32.cont [6/16] 0.0, 128
          %716 = vxpose.xlu0.b32.cont [7/16] 0.0, 128
          %717 = vxpose.xlu0.b32.cont [8/16] 0.0, 128
          %718 = vxpose.xlu0.b32.cont [9/16] 0.0, 128
          %719 = vxpose.xlu0.b32.cont [10/16] 0.0, 128
          %720 = vxpose.xlu0.b32.cont [11/16] 0.0, 128
          %721 = vxpose.xlu0.b32.cont [12/16] 0.0, 128
          %722 = vxpose.xlu0.b32.cont [13/16] 0.0, 128
          %723 = vxpose.xlu0.b32.cont [14/16] 0.0, 128
          %724 = vxpose.xlu0.b32.cont [15/16] 0.0, 128
          %725 = vxpose.xlu0.b32.end [16/16] 0.0, 128
          %v726 = vpop.trf.xlu0
          %v727 = vpop.trf.xlu0
          %v728 = vpop.trf.xlu0
          %v729 = vpop.trf.xlu0
          %v730 = vpop.trf.xlu0
          %v731 = vpop.trf.xlu0
          %v732 = vpop.trf.xlu0
          %v733 = vpop.trf.xlu0
          %v734 = vpop.trf.xlu0
          %v735 = vpop.trf.xlu0
          %v736 = vpop.trf.xlu0
          %v737 = vpop.trf.xlu0
          %v738 = vpop.trf.xlu0
          %v739 = vpop.trf.xlu0
          %v740 = vpop.trf.xlu0
          %v741 = vpop.trf.xlu0
          %vm742 = vcmask 64512
          %v744 = vsel %vm742, %v726, 0
          %v747 = vsel %vm742, %v727, 0
          %v750 = vsel %vm742, %v728, 0
          %v753 = vsel %vm742, %v729, 0
          %v756 = vsel %vm742, %v730, 0
          %v759 = vsel %vm742, %v731, 0
          %v762 = vsel %vm742, %v732, 0
          %v765 = vsel %vm742, %v733, 0
          %v768 = vsel %vm742, %v734, 0
          %v771 = vsel %vm742, %v735, 0
          %v774 = vsel %vm742, %v736, 0
          %v777 = vsel %vm742, %v737, 0
          %v780 = vsel %vm742, %v738, 0
          %v783 = vsel %vm742, %v739, 0
          %v786 = vsel %vm742, %v740, 0
          %v789 = vsel %vm742, %v741, 0
          %791 = vmatpush.msra.mxu0 0.0
          %792 = vmatpush.msra.mxu0 0.0
          %793 = vmatpush.msra.mxu0 0.0
          %794 = vmatpush.msra.mxu0 0.0
          %795 = vmatpush.msra.mxu0 0.0
          %796 = vmatpush.msra.mxu0 0.0
          %797 = vmatpush.msra.mxu0 0.0
          %798 = vmatpush.msra.mxu0 0.0
          %799 = vmatpush.msra.mxu0 0.0
          %800 = vmatpush.msra.mxu0 0.0
          %801 = vmatpush.msra.mxu0 0.0
          %802 = vmatpush.msra.mxu0 0.0
          %803 = vmatpush.msra.mxu0 0.0
          %804 = vmatpush.msra.mxu0 0.0
          %805 = vmatpush.msra.mxu0 0.0
          %806 = vmatpush.msra.mxu0 %v691
          %807 = vmatmul.f32.gmra.mxu0 %v744
          %v808 = vpop.f32.mrf.mxu0
          %v809 = vadd.f32 0.0, %v808
          %810 = vmatmul.f32.gmra.mxu0 %v747
          %v811 = vpop.f32.mrf.mxu0
          %v812 = vadd.f32 0.0, %v811
          %813 = vmatmul.f32.gmra.mxu0 %v750
          %v814 = vpop.f32.mrf.mxu0
          %v815 = vadd.f32 0.0, %v814
          %816 = vmatmul.f32.gmra.mxu0 %v753
          %v817 = vpop.f32.mrf.mxu0
          %v818 = vadd.f32 0.0, %v817
          %819 = vmatmul.f32.gmra.mxu0 %v756
          %v820 = vpop.f32.mrf.mxu0
          %v821 = vadd.f32 0.0, %v820
          %822 = vmatmul.f32.gmra.mxu0 %v759
          %v823 = vpop.f32.mrf.mxu0
          %v824 = vadd.f32 0.0, %v823
          %825 = vmatmul.f32.gmra.mxu0 %v762
          %v826 = vpop.f32.mrf.mxu0
          %v827 = vadd.f32 0.0, %v826
          %828 = vmatmul.f32.gmra.mxu0 %v765
          %v829 = vpop.f32.mrf.mxu0
          %v830 = vadd.f32 0.0, %v829
          %831 = vmatmul.f32.gmra.mxu0 %v768
          %v832 = vpop.f32.mrf.mxu0
          %v833 = vadd.f32 0.0, %v832
          %834 = vmatmul.f32.gmra.mxu0 %v771
          %v835 = vpop.f32.mrf.mxu0
          %v836 = vadd.f32 0.0, %v835
          %837 = vmatmul.f32.gmra.mxu0 %v774
          %v838 = vpop.f32.mrf.mxu0
          %v839 = vadd.f32 0.0, %v838
          %840 = vmatmul.f32.gmra.mxu0 %v777
          %v841 = vpop.f32.mrf.mxu0
          %v842 = vadd.f32 0.0, %v841
          %843 = vmatmul.f32.gmra.mxu0 %v780
          %v844 = vpop.f32.mrf.mxu0
          %v845 = vadd.f32 0.0, %v844
          %846 = vmatmul.f32.gmra.mxu0 %v783
          %v847 = vpop.f32.mrf.mxu0
          %v848 = vadd.f32 0.0, %v847
          %849 = vmatmul.f32.gmra.mxu0 %v786
          %v850 = vpop.f32.mrf.mxu0
          %v851 = vadd.f32 0.0, %v850
          %852 = vmatmul.f32.gmra.mxu0 %v789
          %v853 = vpop.f32.mrf.mxu0
          %v854 = vadd.f32 0.0, %v853
          %855 = vdwg.mxu0
          %v856 = vld [vmem:[#allocation15] sm:$0xff]
          %v857 = vld [vmem:[#allocation15 + $0x8] sm:$0xff]
          %v858 = vld [vmem:[#allocation15 + $0x10] sm:$0xff]
          %v859 = vld [vmem:[#allocation15 + $0x18] sm:$0xff]
          %v860 = vld [vmem:[#allocation15 + $0x20] sm:$0xff]
          %v861 = vld [vmem:[#allocation15 + $0x28] sm:$0xff]
          %v862 = vld [vmem:[#allocation15 + $0x30] sm:$0xff]
          %v863 = vld [vmem:[#allocation15 + $0x38] sm:$0xff]
          %v864 = vld [vmem:[#allocation15 + $0x40] sm:$0xff]
          %v865 = vld [vmem:[#allocation15 + $0x48] sm:$0xff]
          %v866 = vld [vmem:[#allocation15 + $0x50] sm:$0xff]
          %v867 = vld [vmem:[#allocation15 + $0x58] sm:$0xff]
          %v868 = vld [vmem:[#allocation15 + $0x60] sm:$0xff]
          %v869 = vld [vmem:[#allocation15 + $0x68] sm:$0xff]
          %v870 = vld [vmem:[#allocation15 + $0x70] sm:$0xff]
          %v871 = vld [vmem:[#allocation15 + $0x78] sm:$0xff]
          %v872 = vmul.f32 %v809, %v856
          %v873 = vmul.f32 %v812, %v857
          %v874 = vmul.f32 %v815, %v858
          %v875 = vmul.f32 %v818, %v859
          %v876 = vmul.f32 %v821, %v860
          %v877 = vmul.f32 %v824, %v861
          %v878 = vmul.f32 %v827, %v862
          %v879 = vmul.f32 %v830, %v863
          %v880 = vmul.f32 %v833, %v864
          %v881 = vmul.f32 %v836, %v865
          %v882 = vmul.f32 %v839, %v866
          %v883 = vmul.f32 %v842, %v867
          %v884 = vmul.f32 %v845, %v868
          %v885 = vmul.f32 %v848, %v869
          %v886 = vmul.f32 %v851, %v870
          %v887 = vmul.f32 %v854, %v871
          %888 = vst [vmem:[#allocation2] sm:$0xff] %v872
          %889 = vst [vmem:[#allocation2 + $0x8] sm:$0xff] %v873
          %890 = vst [vmem:[#allocation2 + $0x10] sm:$0xff] %v874
          %891 = vst [vmem:[#allocation2 + $0x18] sm:$0xff] %v875
          %892 = vst [vmem:[#allocation2 + $0x20] sm:$0xff] %v876
          %893 = vst [vmem:[#allocation2 + $0x28] sm:$0xff] %v877
          %894 = vst [vmem:[#allocation2 + $0x30] sm:$0xff] %v878
          %895 = vst [vmem:[#allocation2 + $0x38] sm:$0xff] %v879
          %896 = vst [vmem:[#allocation2 + $0x40] sm:$0xff] %v880
          %897 = vst [vmem:[#allocation2 + $0x48] sm:$0xff] %v881
          %898 = vst [vmem:[#allocation2 + $0x50] sm:$0xff] %v882
          %899 = vst [vmem:[#allocation2 + $0x58] sm:$0xff] %v883
          %900 = vst [vmem:[#allocation2 + $0x60] sm:$0xff] %v884
          %901 = vst [vmem:[#allocation2 + $0x68] sm:$0xff] %v885
          %902 = vst [vmem:[#allocation2 + $0x70] sm:$0xff] %v886
          %903 = vst [vmem:[#allocation2 + $0x78] sm:$0xff] %v887
        $region104: #{tpu_custom_call.1} parent=67 // pred_fallthru
          _
        %v904 = vld [vmem:[%s510] sm:$0xff]
        %v905 = vld [vmem:[#allocation9] sm:$0xff]
        %v906 = vld [vmem:[#allocation9 + $0x8] sm:$0xff]
        %v907 = vld [vmem:[#allocation9 + $0x10] sm:$0xff]
        %v908 = vld [vmem:[#allocation9 + $0x18] sm:$0xff]
        %v909 = vld [vmem:[#allocation9 + $0x20] sm:$0xff]
        %v910 = vld [vmem:[#allocation9 + $0x28] sm:$0xff]
        %v911 = vld [vmem:[#allocation9 + $0x30] sm:$0xff]
        %v912 = vld [vmem:[#allocation9 + $0x38] sm:$0xff]
        %v913 = vld [vmem:[#allocation9 + $0x40] sm:$0xff]
        %v914 = vld [vmem:[#allocation9 + $0x48] sm:$0xff]
        %v915 = vld [vmem:[#allocation9 + $0x50] sm:$0xff]
        %v916 = vld [vmem:[#allocation9 + $0x58] sm:$0xff]
        %v917 = vld [vmem:[#allocation9 + $0x60] sm:$0xff]
        %v918 = vld [vmem:[#allocation9 + $0x68] sm:$0xff]
        %v919 = vld [vmem:[#allocation9 + $0x70] sm:$0xff]
        %v920 = vld [vmem:[#allocation9 + $0x78] sm:$0xff]
        %v921 = vld [vmem:[%s4] sm:$0x1]
        %v923 = vperm.slane %v921, 0
        %925 = vmatpush.msra.mxu0 %v920
        %926 = vmatpush.msra.mxu0 %v919
        %927 = vmatpush.msra.mxu0 %v918
        %928 = vmatpush.msra.mxu0 %v917
        %929 = vmatpush.msra.mxu0 %v916
        %930 = vmatpush.msra.mxu0 %v915
        %931 = vmatpush.msra.mxu0 %v914
        %932 = vmatpush.msra.mxu0 %v913
        %933 = vmatpush.msra.mxu0 %v912
        %934 = vmatpush.msra.mxu0 %v911
        %935 = vmatpush.msra.mxu0 %v910
        %936 = vmatpush.msra.mxu0 %v909
        %937 = vmatpush.msra.mxu0 %v908
        %938 = vmatpush.msra.mxu0 %v907
        %939 = vmatpush.msra.mxu0 %v906
        %940 = vmatpush.msra.mxu0 %v905
        %941 = vmatmul.f32.gmra.mxu0 %v904
        %v942 = vpop.f32.mrf.mxu0
        %v943 = vadd.f32 %v923, %v942
        %944 = vdwg.mxu0
        %945 = vmax.xlane.f32.xlu0 %v943
        %v946 = vpop.xlane.xlu0 %945
        %v947 = vsub.f32 %v943, %v946
        %v948 = vmul.f32 %v947, 1.442695
        %v949 = vpow.pop %v948
        %v950 = vld [vmem:[#allocation2] sm:$0xff]
        %v951 = vld [vmem:[#allocation2 + $0x8] sm:$0xff]
        %v952 = vld [vmem:[#allocation2 + $0x10] sm:$0xff]
        %v953 = vld [vmem:[#allocation2 + $0x18] sm:$0xff]
        %v954 = vld [vmem:[#allocation2 + $0x20] sm:$0xff]
        %v955 = vld [vmem:[#allocation2 + $0x28] sm:$0xff]
        %v956 = vld [vmem:[#allocation2 + $0x30] sm:$0xff]
        %v957 = vld [vmem:[#allocation2 + $0x38] sm:$0xff]
        %v958 = vld [vmem:[#allocation2 + $0x40] sm:$0xff]
        %v959 = vld [vmem:[#allocation2 + $0x48] sm:$0xff]
        %v960 = vld [vmem:[#allocation2 + $0x50] sm:$0xff]
        %v961 = vld [vmem:[#allocation2 + $0x58] sm:$0xff]
        %v962 = vld [vmem:[#allocation2 + $0x60] sm:$0xff]
        %v963 = vld [vmem:[#allocation2 + $0x68] sm:$0xff]
        %v964 = vld [vmem:[#allocation2 + $0x70] sm:$0xff]
        %v965 = vld [vmem:[#allocation2 + $0x78] sm:$0xff]
        %966 = vmatpush.msra.mxu0 %v965
        %967 = vmatpush.msra.mxu0 %v964
        %968 = vmatpush.msra.mxu0 %v963
        %969 = vmatpush.msra.mxu0 %v962
        %970 = vmatpush.msra.mxu0 %v961
        %971 = vmatpush.msra.mxu0 %v960
        %972 = vmatpush.msra.mxu0 %v959
        %973 = vmatpush.msra.mxu0 %v958
        %974 = vmatpush.msra.mxu0 %v957
        %975 = vmatpush.msra.mxu0 %v956
        %976 = vmatpush.msra.mxu0 %v955
        %977 = vmatpush.msra.mxu0 %v954
        %978 = vmatpush.msra.mxu0 %v953
        %979 = vmatpush.msra.mxu0 %v952
        %980 = vmatpush.msra.mxu0 %v951
        %981 = vmatpush.msra.mxu0 %v950
        %982 = vmatmul.f32.gmra.mxu0 %v949
        %v983 = vpop.f32.mrf.mxu0
        %v984 = vadd.f32 0.0, %v983
        %985 = vdwg.mxu0
        %v986 = vld [vmem:[#allocation15] sm:$0xff]
        %v987 = vld [vmem:[#allocation15 + $0x8] sm:$0xff]
        %v988 = vld [vmem:[#allocation15 + $0x10] sm:$0xff]
        %v989 = vld [vmem:[#allocation15 + $0x18] sm:$0xff]
        %v990 = vld [vmem:[#allocation15 + $0x20] sm:$0xff]
        %v991 = vld [vmem:[#allocation15 + $0x28] sm:$0xff]
        %v992 = vld [vmem:[#allocation15 + $0x30] sm:$0xff]
        %v993 = vld [vmem:[#allocation15 + $0x38] sm:$0xff]
        %v994 = vld [vmem:[#allocation15 + $0x40] sm:$0xff]
        %v995 = vld [vmem:[#allocation15 + $0x48] sm:$0xff]
        %v996 = vld [vmem:[#allocation15 + $0x50] sm:$0xff]
        %v997 = vld [vmem:[#allocation15 + $0x58] sm:$0xff]
        %v998 = vld [vmem:[#allocation15 + $0x60] sm:$0xff]
        %v999 = vld [vmem:[#allocation15 + $0x68] sm:$0xff]
        %v1000 = vld [vmem:[#allocation15 + $0x70] sm:$0xff]
        %v1001 = vld [vmem:[#allocation15 + $0x78] sm:$0xff]
        %1002 = vmatpush.msra.mxu0 %v1001
        %1003 = vmatpush.msra.mxu0 %v1000
        %1004 = vmatpush.msra.mxu0 %v999
        %1005 = vmatpush.msra.mxu0 %v998
        %1006 = vmatpush.msra.mxu0 %v997
        %1007 = vmatpush.msra.mxu0 %v996
        %1008 = vmatpush.msra.mxu0 %v995
        %1009 = vmatpush.msra.mxu0 %v994
        %1010 = vmatpush.msra.mxu0 %v993
        %1011 = vmatpush.msra.mxu0 %v992
        %1012 = vmatpush.msra.mxu0 %v991
        %1013 = vmatpush.msra.mxu0 %v990
        %1014 = vmatpush.msra.mxu0 %v989
        %1015 = vmatpush.msra.mxu0 %v988
        %1016 = vmatpush.msra.mxu0 %v987
        %1017 = vmatpush.msra.mxu0 %v986
        %1018 = vmatmul.f32.gmra.mxu0 %v949
        %v1019 = vpop.f32.mrf.mxu0
        %v1020 = vadd.f32 0.0, %v1019
        %1021 = vdwg.mxu0
        %v1022 = vrcp.pop %v1020
        %v1023 = vmul.f32 %v984, %v1022
        %v1024 = vld [vmem:[#allocation14] sm:$0xff]
        %v1025 = vld [vmem:[#allocation14 + $0x8] sm:$0xff]
        %v1026 = vld [vmem:[#allocation14 + $0x10] sm:$0xff]
        %v1027 = vld [vmem:[#allocation14 + $0x18] sm:$0xff]
        %v1028 = vld [vmem:[#allocation14 + $0x20] sm:$0xff]
        %v1029 = vld [vmem:[#allocation14 + $0x28] sm:$0xff]
        %v1030 = vld [vmem:[#allocation14 + $0x30] sm:$0xff]
        %v1031 = vld [vmem:[#allocation14 + $0x38] sm:$0xff]
        %v1032 = vld [vmem:[#allocation14 + $0x40] sm:$0xff]
        %v1033 = vld [vmem:[#allocation14 + $0x48] sm:$0xff]
        %v1034 = vld [vmem:[#allocation14 + $0x50] sm:$0xff]
        %v1035 = vld [vmem:[#allocation14 + $0x58] sm:$0xff]
        %v1036 = vld [vmem:[#allocation14 + $0x60] sm:$0xff]
        %v1037 = vld [vmem:[#allocation14 + $0x68] sm:$0xff]
        %v1038 = vld [vmem:[#allocation14 + $0x70] sm:$0xff]
        %v1039 = vld [vmem:[#allocation14 + $0x78] sm:$0xff]
        %v1040 = vld [vmem:[%s10] sm:$0x1]
        %v1042 = vperm.slane %v1040, 0
        %1044 = vmatpush.msra.mxu0 %v1039
        %1045 = vmatpush.msra.mxu0 %v1038
        %1046 = vmatpush.msra.mxu0 %v1037
        %1047 = vmatpush.msra.mxu0 %v1036
        %1048 = vmatpush.msra.mxu0 %v1035
        %1049 = vmatpush.msra.mxu0 %v1034
        %1050 = vmatpush.msra.mxu0 %v1033
        %1051 = vmatpush.msra.mxu0 %v1032
        %1052 = vmatpush.msra.mxu0 %v1031
        %1053 = vmatpush.msra.mxu0 %v1030
        %1054 = vmatpush.msra.mxu0 %v1029
        %1055 = vmatpush.msra.mxu0 %v1028
        %1056 = vmatpush.msra.mxu0 %v1027
        %1057 = vmatpush.msra.mxu0 %v1026
        %1058 = vmatpush.msra.mxu0 %v1025
        %1059 = vmatpush.msra.mxu0 %v1024
        %1060 = vmatmul.f32.gmra.mxu0 %v1023
        %v1061 = vpop.f32.mrf.mxu0
        %v1062 = vadd.f32 %v1042, %v1061
        %1063 = vdwg.mxu0
        %1064 = vst [vmem:[%s606] sm:$0xff] %v1062
        %s1065 = sand.u32 %s326, 1
        %s1066 = scalar_lea.sflag [#allocation5], %s1065
        %s1067 = sand.u32 %s326, 1
        %s1068 = smul.addr %s1067, 8
        %s1069 = scalar_lea.vmem [#allocation17], %s1068
        // Predicated region
        $region105: #{tpu_custom_call.1} parent=67 // pred_check
          %p1070 = pneg %p336
        $region106: #{tpu_custom_call.1} parent=67 // pred_check_branch
          %1072 = sbr.rel (%p1070) target = $region108
        $region107: #{tpu_custom_call.1} parent=67 // pred_region
          %1074 = vsyncadd %s1066, 0
          %s1075 = smul.addr %s40, 2
          %s1076 = sadd.s32 %s39, %s1075
          %s1077 = smul.addr %s1076, 8
          %s1078 = scalar_lea.hbm %s12, %s1077
          %s1080 = sshll.u32 %s1069, 4
          %s1081 = int_to_ptr.vmem [resolvable:$true] %s1080
          %s1082 = sshll.u32 %s1078, 4
          %s1083 = int_to_ptr.hbm [resolvable:$true] %s1082
          %1085 = dma.vmem_to_hbm [thread:$0]  %s1081, 128, %s1083, %s1066
        $region108: #{tpu_custom_call.1} parent=67 // pred_fallthru
          _
      $region68: #{tpu_custom_call.1} parent=5 // pred_fallthru
        _
      %p1086 = scmp.le.s32.totalorder 2, %s30
      // Predicated region
      $region109: #{tpu_custom_call.1} parent=5 // pred_check
        %p1087 = pneg %p1086
      $region110: #{tpu_custom_call.1} parent=5 // pred_check_branch
        %1089 = sbr.rel (%p1087) target = $region112
      $region111: #{tpu_custom_call.1} parent=5 // pred_region
        %s1090 = ssub.s32 %s30, 2
        // Predicated region
        $region113: #{tpu_custom_call.1} parent=111 // pred_check
          %p1091 = pneg %p342
        $region114: #{tpu_custom_call.1} parent=111 // pred_check_branch
          %1093 = sbr.rel (%p1091) target = $region116
        $region115: #{tpu_custom_call.1} parent=111 // pred_region
          %s1094 = sand.u32 %s327, 1
          %s1095 = scalar_lea.sflag [#allocation5], %s1094
          %s1096 = sand.u32 %s327, 1
          %s1097 = smul.addr %s1096, 8
          %s1098 = scalar_lea.vmem [#allocation17], %s1097
          %1100 = dma.done %s1095, 128
        $region116: #{tpu_custom_call.1} parent=111 // pred_fallthru
          _
      $region112: #{tpu_custom_call.1} parent=5 // pred_fallthru
        _
    $region6: #{tpu_custom_call.1} parent=1 // loop_footer
      %s34 = sadd.s32 1, %s30
    $region7: #{tpu_custom_call.1} parent=1 // loop_footer_branch
      %29 = sbr.rel target = $region3
    $region8: #{tpu_custom_call.1} parent=1 // loop_exit
      _
    %1101 = vsyncpa [#allocation4], 1
    %s1102 = scalar_lea.sflag [#allocation4], 1
    %1103 = vsyncpa %s1102, 1
    %1104 = vsyncpa [#allocation7], 1
    %s1105 = scalar_lea.sflag [#allocation7], 1
    %1106 = vsyncpa %s1105, 1
    %1107 = vsyncpa [#allocation10], 1
    %1108 = vsyncpa [#allocation13], 1
    %1109 = vsyncpa [#allocation16], 1
    %1110 = vsyncpa [#allocation5], 1
    %s1111 = scalar_lea.sflag [#allocation5], 1
    %1112 = vsyncpa %s1111, 1

</llo_original>
